<compile_context>
chip_gen: v5e
topology: v5e:2x2
jax: 0.10.0
libtpu: 0.0.40
codegen_flags: <defaults>
</compile_context>

<pallas_src>
import functools

import jax
import jax.numpy as jnp
import numpy as np
from jax.experimental import pallas as pl
from jax.experimental.pallas import tpu as pltpu

EPS = 1e-9     # Dice / BatchNorm eps
NEG = 1.0e9    # mask fill value


def _round_up(n, m):
    return ((n + m - 1) // m) * m


def _vmem_capacity_bytes():
    """Physical VMEM of the attached TPU; conservative fallback (v7x = 64 MiB)."""
    try:
        cap = getattr(pltpu.get_tpu_info(), "vmem_capacity_bytes", None)
        if cap:
            return int(cap)
    except Exception:
        pass
    return 64 * 1024 * 1024


def _auto_tile_b(L, D2, H1, H1p, H2, H2p, cbytes, hbytes, vmem_cap):
    """Largest batch tile whose per-tile live set fits a fraction of VMEM."""
    budget = max(4 * 1024 * 1024, int(vmem_cap * 0.35))
    # dominant per-batch-row VMEM bytes per phase (streamed blocks counted 2x
    # for double buffering, f32 intermediates at 4 B):
    row0 = L * (2 * 2 * D2 * cbytes + 2 * D2 * cbytes + (H1p + H1) * 4 + 2 * H1 * hbytes)
    row1 = L * (2 * H1 * hbytes + 3 * H1 * 4 + H1 * cbytes + 2 * H2p * 4 + 2 * H2 * hbytes)
    row2 = L * (2 * 2 * D2 * cbytes + 2 * D2 * cbytes + 2 * H2 * hbytes + 3 * H2 * 4 + 8)
    row = max(row0, row1, row2, 1)
    return int(max(8, min(256, (budget // row) // 8 * 8)))


# ----------------------------------------------------------------------------
# Kernel 1: activation-unit layer-1 pre-activation -> h1 cache + BN partials
# ----------------------------------------------------------------------------
def _au_layer1_kernel(q_ref, ub_ref, wq_ref, wk_ref, b1_ref,
                      h1c_ref, s1_ref, *, b_true, b_pad):
    i = pl.program_id(0)
    q = q_ref[...]                                    # [TB, 2D]   compute dtype
    ub = ub_ref[...]                                  # [TB, L, 2D]
    TB, L, D2 = ub.shape
    H1 = h1c_ref.shape[-1]

    # fused K=4D operand [ub | q*ub]: wq already folds the (q - ub) rows onto
    # the query side, wk folds them onto the behavior side.        (review #3)
    attn_in = jnp.concatenate([ub, q[:, None, :] * ub], axis=-1)      # [TB, L, 4D]
    h1 = jnp.dot(attn_in.reshape(TB * L, 2 * D2), wk_ref[...],
                 preferred_element_type=jnp.float32)                  # [TB*L, H1p]
    q1 = jnp.dot(q, wq_ref[...], preferred_element_type=jnp.float32) + b1_ref[...]
    h1 = h1.reshape(TB, L, -1) + q1[:, None, :]       # implicit broadcast (review #4)
    h1 = h1[:, :, :H1]                                # drop padded lanes for the cache

    h1c_ref[...] = h1.astype(h1c_ref.dtype)

    # per-tile centered BN partial sums (merged in JAX between calls)
    hf = h1.reshape(TB * L, H1)
    if b_pad > b_true:                                # rows added by batch padding
        r = jax.lax.broadcasted_iota(jnp.int32, (TB * L, 1), 0)
        valid = ((i * TB + r // L) < b_true).astype(jnp.float32)
        n_t = (jnp.minimum(TB, b_true - i * TB) * L).astype(jnp.float32)
        hf = hf * valid
    else:
        valid = None
        n_t = jnp.float32(TB * L)
    s = jnp.sum(hf, axis=0, keepdims=True)            # [1, H1]
    hc = hf - s / n_t
    if valid is not None:
        hc = hc * valid
    m2 = jnp.sum(hc * hc, axis=0, keepdims=True)      # [1, H1]
    s1_ref[...] = jnp.concatenate([s, m2], axis=0)[None, :, :]


# ----------------------------------------------------------------------------
# Kernel 2: Dice-1 + layer-2 from the h1 cache (ub NOT re-read) -> h2 cache
# ----------------------------------------------------------------------------
def _au_layer2_kernel(h1c_ref, st1_ref, a1_ref, w2_ref, b2_ref,
                      h2c_ref, s2_ref, *, b_true, b_pad):
    i = pl.program_id(0)
    TB, L, H1 = h1c_ref.shape
    H2 = h2c_ref.shape[-1]

    h1 = h1c_ref[...].astype(jnp.float32).reshape(TB * L, H1)
    alpha = a1_ref[...]                               # [1, H1]
    gate = jax.nn.sigmoid((h1 - st1_ref[0:1, :]) * st1_ref[1:2, :])   # BN-normalized
    d1 = h1 * (alpha + (1.0 - alpha) * gate)          # == p*h + alpha*(1-p)*h

    h2 = jnp.dot(d1.astype(w2_ref.dtype), w2_ref[...],
                 preferred_element_type=jnp.float32) + b2_ref[...]    # [TB*L, H2p]
    h2 = h2[:, :H2]
    h2c_ref[...] = h2.reshape(TB, L, H2).astype(h2c_ref.dtype)

    if b_pad > b_true:
        r = jax.lax.broadcasted_iota(jnp.int32, (TB * L, 1), 0)
        valid = ((i * TB + r // L) < b_true).astype(jnp.float32)
        n_t = (jnp.minimum(TB, b_true - i * TB) * L).astype(jnp.float32)
        h2 = h2 * valid
    else:
        valid = None
        n_t = jnp.float32(TB * L)
    s = jnp.sum(h2, axis=0, keepdims=True)
    hc = h2 - s / n_t
    if valid is not None:
        hc = hc * valid
    m2 = jnp.sum(hc * hc, axis=0, keepdims=True)
    s2_ref[...] = jnp.concatenate([s, m2], axis=0)[None, :, :]


# ----------------------------------------------------------------------------
# Kernel 3: Dice-2 -> masked softmax -> attention pooling -> top MLP -> logits
# ----------------------------------------------------------------------------
def _din_head_kernel(h2c_ref, st2_ref, a2_ref, w3_ref, mask_ref, ub_ref, q_ref,
                     m1u_ref, m1q_ref, mb1_ref, m2_ref, mb2_ref, m3_ref,
                     b3_ref, mb3_ref, logits_ref, *, approx_recip):
    TB, L, H2 = h2c_ref.shape

    h2 = h2c_ref[...].astype(jnp.float32)             # [TB, L, H2]
    alpha = a2_ref[...]                               # [1, H2] broadcasts over (TB,L,H2)
    gate = jax.nn.sigmoid((h2 - st2_ref[0:1, :]) * st2_ref[1:2, :])
    d2 = h2 * (alpha + (1.0 - alpha) * gate)

    # final scalar layer of the activation unit: VPU multiply + lane reduce
    scores = jnp.sum(d2 * w3_ref[...], axis=-1) + b3_ref[0, 0]        # [TB, L]
    scores = scores - (1.0 - mask_ref[...]) * NEG
    # masked softmax over the (lane) sequence axis, kept in f32
    smax = jnp.max(scores, axis=-1, keepdims=True)
    e = jnp.exp(scores - smax)
    denom = jnp.sum(e, axis=-1, keepdims=True)
    if approx_recip:
        attn = e * pl.reciprocal(denom, approx=True)  # EUP slot
    else:
        attn = e / denom                              # exact (f32 mode)

    # attention pooling: bf16 multiply, f32 reduction (no f32 copy of ub)
    ub = ub_ref[...]                                  # [TB, L, 2D]
    ui = jnp.sum(attn.astype(ub.dtype)[:, :, None] * ub, axis=1,
                 dtype=jnp.float32)                   # [TB, 2D] f32

    # top MLP; m1 split so [user_interest, query] is never concatenated
    q = q_ref[...]
    z = (jnp.dot(ui.astype(m1u_ref.dtype), m1u_ref[...],
                 preferred_element_type=jnp.float32)
         + jnp.dot(q, m1q_ref[...], preferred_element_type=jnp.float32)
         + mb1_ref[...])
    z = jnp.maximum(z, 0.0)
    z = jnp.dot(z.astype(m2_ref.dtype), m2_ref[...],
                preferred_element_type=jnp.float32) + mb2_ref[...]
    z = jnp.maximum(z, 0.0)
    logits_ref[...] = (jnp.sum(z * m3_ref[...], axis=-1, keepdims=True)
                       + mb3_ref[0, 0])               # [TB, 1]


# ----------------------------------------------------------------------------
# Plain-JAX glue: merge per-tile BN partial sums (numerically stable)
# ----------------------------------------------------------------------------
def _finalize_bn_stats(parts, counts, n_total):
    """parts: [NB, 2, H] (row0=sum, row1=per-tile centered M2) -> [mean; rstd]."""
    sums, m2s = parts[:, 0, :], parts[:, 1, :]        # [NB, H]
    mean_t = sums / counts[:, None]
    mean = jnp.sum(sums, axis=0) / n_total
    var = (jnp.sum(m2s, axis=0)
           + jnp.sum(counts[:, None] * jnp.square(mean_t - mean[None, :]), axis=0)
           ) / n_total
    return jnp.stack([mean, jax.lax.rsqrt(var + EPS)], axis=0)        # [2, H]


# ----------------------------------------------------------------------------
# Wrapper (embedding lookups, weight prep, three pallas_calls, loss)
# ----------------------------------------------------------------------------
def din_forward(params, hist_item_ids, hist_cate_ids,
                target_item_id, target_cate_id, click_label,
                *, compute_dtype=jnp.bfloat16, block_b=None):
    item_emb, cate_emb = params["item_emb"], params["cate_emb"]

    # Embedding gathers + loss / sigmoid are plain-JAX glue around the kernels.
    # TODO(synk): fuse the gathers into call 1 (scalar prefetch + manual DMA).
    tgt_item = item_emb[target_item_id]                         # [B, D]
    tgt_cate = cate_emb[target_cate_id]                         # [B, D]
    mask = (hist_item_ids > 0).astype(jnp.float32)              # [B, L]
    ui = item_emb[hist_item_ids] * mask[..., None]
    uc = cate_emb[hist_cate_ids] * mask[..., None]
    user_behavior = jnp.concatenate([ui, uc], axis=-1)          # [B, L, 2D]
    query = jnp.concatenate([tgt_item, tgt_cate], axis=-1)      # [B, 2D]

    B, L, D2 = user_behavior.shape
    cdt = jnp.dtype(compute_dtype)
    cache_dt = cdt                                              # h1/h2 HBM caches

    H1, H2 = params["w1"].shape[1], params["w2"].shape[1]
    H1p, H2p = _round_up(H1, 128), _round_up(H2, 128)
    P1 = _round_up(params["m1"].shape[1], 128)                  # 2D -> lane multiple
    P2 = _round_up(params["m2"].shape[1], 128)                  # D  -> lane multiple

    # ---- per-generation batch tile + VMEM limit (review #2) ------------------
    vmem_cap = _vmem_capacity_bytes()
    tb_target = block_b if block_b is not None else _auto_tile_b(
        L, D2, H1, H1p, H2, H2p, cdt.itemsize, jnp.dtype(cache_dt).itemsize, vmem_cap)
    if B <= tb_target:
        TB, NB, B_pad = B, 1, B
    else:
        TB = max(8, (tb_target // 8) * 8)
        NB = -(-B // TB)
        B_pad = NB * TB
    if B_pad != B:
        pad = B_pad - B
        query = jnp.pad(query, ((0, pad), (0, 0)))
        user_behavior = jnp.pad(user_behavior, ((0, pad), (0, 0), (0, 0)))
        mask = jnp.pad(mask, ((0, pad), (0, 0)))
    counts = jnp.asarray(np.minimum(TB, B - TB * np.arange(NB)) * L, jnp.float32)
    n_total = float(B * L)

    # ---- weight prep: split w1/m1, zero-pad matmul output dims to 128 lanes --
    def pad_c(x, c):
        return jnp.pad(x, ((0, 0), (0, c - x.shape[1])))

    def pad_rc(x, r, c):
        return jnp.pad(x, ((0, r - x.shape[0]), (0, c - x.shape[1])))

    w_q, w_ub, w_df, w_pr = jnp.split(params["w1"], 4, axis=0)  # rows: q, ub, q-ub, q*ub
    wq = pad_c(w_q + w_df, H1p).astype(cdt)                     # [2D, H1p]
    wk = pad_c(jnp.concatenate([w_ub - w_df, w_pr], axis=0), H1p).astype(cdt)  # [4D, H1p]
    b1 = pad_c(params["b1"], H1p)                               # f32
    a1 = params["a1"]                                           # [1, H1] f32
    w2 = pad_c(params["w2"], H2p).astype(cdt)                   # [H1, H2p]
    b2 = pad_c(params["b2"], H2p)
    a2 = params["a2"]                                           # [1, H2] f32
    w3 = params["w3"]                                           # [1, H2] f32 (VPU)
    m1u, m1q = jnp.split(params["m1"], 2, axis=0)               # rows: user_interest, query
    m1u = pad_c(m1u, P1).astype(cdt)
    m1q = pad_c(m1q, P1).astype(cdt)
    mb1 = pad_c(params["mb1"], P1)
    m2 = pad_rc(params["m2"], P1, P2).astype(cdt)
    mb2 = pad_c(params["mb2"], P2)
    m3 = pad_c(params["m3"], P2)                                # f32 (VPU)
    b3, mb3 = params["b3"], params["mb3"]                       # (1,1) scalars -> SMEM

    q_in = query.astype(cdt)
    ub_in = user_behavior.astype(cdt)

    resident = lambda a: pl.BlockSpec(a.shape, lambda i: (0,) * a.ndim)
    smem = pl.BlockSpec(memory_space=pltpu.MemorySpace.SMEM)
    # TODO(synk): single-buffer the resident weights (pl.Buffered(1)) to reclaim
    #   a little more VMEM headroom on v7x.
    cparams = pltpu.CompilerParams(
        dimension_semantics=("parallel",),                      # megacore on v7x
        vmem_limit_bytes=int(min(vmem_cap * 0.7, 96 * 1024 * 1024)))

    # ---- call 1: layer-1 pre-activation -> h1 cache + BN partial sums --------
    h1c, s1 = pl.pallas_call(
        functools.partial(_au_layer1_kernel, b_true=B, b_pad=B_pad),
        grid=(NB,),
        in_specs=[pl.BlockSpec((TB, D2), lambda i: (i, 0)),
                  pl.BlockSpec((TB, L, D2), lambda i: (i, 0, 0)),
                  resident(wq), resident(wk), resident(b1)],
        out_specs=[pl.BlockSpec((TB, L, H1), lambda i: (i, 0, 0)),
                   pl.BlockSpec((1, 2, H1), lambda i: (i, 0, 0))],
        out_shape=[jax.ShapeDtypeStruct((B_pad, L, H1), cache_dt),
                   jax.ShapeDtypeStruct((NB, 2, H1), jnp.float32)],
        compiler_params=cparams,
    )(q_in, ub_in, wq, wk, b1)
    st1 = _finalize_bn_stats(s1, counts, n_total)               # [2, H1] f32

    # ---- call 2: Dice-1 + layer-2 from the h1 cache (ub not re-read) ---------
    h2c, s2 = pl.pallas_call(
        functools.partial(_au_layer2_kernel, b_true=B, b_pad=B_pad),
        grid=(NB,),
        in_specs=[pl.BlockSpec((TB, L, H1), lambda i: (i, 0, 0)),
                  resident(st1), resident(a1), resident(w2), resident(b2)],
        out_specs=[pl.BlockSpec((TB, L, H2), lambda i: (i, 0, 0)),
                   pl.BlockSpec((1, 2, H2), lambda i: (i, 0, 0))],
        out_shape=[jax.ShapeDtypeStruct((B_pad, L, H2), cache_dt),
                   jax.ShapeDtypeStruct((NB, 2, H2), jnp.float32)],
        compiler_params=cparams,
    )(h1c, st1, a1, w2, b2)
    st2 = _finalize_bn_stats(s2, counts, n_total)               # [2, H2] f32

    # ---- call 3: Dice-2, masked softmax, attention pooling, top MLP ----------
    # NOTE: logits kept as a (TB, 1) block — the output is negligible HBM-wise
    # and a lane-dense (1, TB) block would place a size-1 second-minor dim in
    # the (8, 128) constraint whenever NB > 1.
    logits = pl.pallas_call(
        functools.partial(_din_head_kernel,
                          approx_recip=(cdt != jnp.dtype(jnp.float32))),
        grid=(NB,),
        in_specs=[pl.BlockSpec((TB, L, H2), lambda i: (i, 0, 0)),
                  resident(st2), resident(a2), resident(w3),
                  pl.BlockSpec((TB, L), lambda i: (i, 0)),
                  pl.BlockSpec((TB, L, D2), lambda i: (i, 0, 0)),
                  pl.BlockSpec((TB, D2), lambda i: (i, 0)),
                  resident(m1u), resident(m1q), resident(mb1),
                  resident(m2), resident(mb2), resident(m3),
                  smem, smem],
        out_specs=pl.BlockSpec((TB, 1), lambda i: (i, 0)),
        out_shape=jax.ShapeDtypeStruct((B_pad, 1), jnp.float32),
        compiler_params=cparams,
    )(h2c, st2, a2, w3, mask, ub_in, q_in,
      m1u, m1q, mb1, m2, mb2, m3, b3, mb3)[:B, 0]

    y = click_label.astype(jnp.float32)
    # BCEWithLogitsLoss (mean reduction), numerically stable
    loss = jnp.mean(jnp.maximum(logits, 0.0) - logits * y
                    + jnp.log1p(jnp.exp(-jnp.abs(logits))))
    predicts = jax.nn.sigmoid(logits)
    return {"loss": loss, "rank_loss": loss, "rank_outputs": predicts,
            "item_ar_loss": jnp.float32(0.0), "cate_ar_loss": jnp.float32(0.0)}


# ----------------------------------------------------------------------------
# Pure-JAX reference (faithful to the PyTorch module, for correctness check)
# ----------------------------------------------------------------------------
def reference_forward(params, hist_item_ids, hist_cate_ids,
                      target_item_id, target_cate_id, click_label):
    item_emb, cate_emb = params["item_emb"], params["cate_emb"]
    tgt_item = item_emb[target_item_id]
    tgt_cate = cate_emb[target_cate_id]
    mask = (hist_item_ids > 0).astype(jnp.float32)
    ui = item_emb[hist_item_ids] * mask[..., None]
    uc = cate_emb[hist_cate_ids] * mask[..., None]
    ub = jnp.concatenate([ui, uc], axis=-1)
    query = jnp.concatenate([tgt_item, tgt_cate], axis=-1)
    B, L, D2 = ub.shape
    q = jnp.broadcast_to(query[:, None, :], (B, L, D2))
    x = jnp.concatenate([q, ub, q - ub, q * ub], axis=-1).reshape(B * L, 4 * D2)

    def dice(h, alpha):
        mu = h.mean(0, keepdims=True)
        var = ((h - mu) ** 2).mean(0, keepdims=True)
        p = jax.nn.sigmoid((h - mu) / jnp.sqrt(var + EPS))
        return p * h + alpha * (1.0 - p) * h

    h = dice(x @ params["w1"] + params["b1"], params["a1"])
    h = dice(h @ params["w2"] + params["b2"], params["a2"])
    scores = (h @ params["w3"].T + params["b3"]).reshape(B, L)
    scores = scores - (1.0 - mask) * NEG
    attn = jax.nn.softmax(scores, axis=1)
    user_interest = jnp.einsum('bl,bld->bd', attn, ub)
    cc = jnp.concatenate([user_interest, tgt_item, tgt_cate], axis=1)
    z = jax.nn.relu(cc @ params["m1"] + params["mb1"])
    z = jax.nn.relu(z @ params["m2"] + params["mb2"])
    logits = (z @ params["m3"].T + params["mb3"])[:, 0]
    y = click_label.astype(jnp.float32)
    loss = jnp.mean(jnp.maximum(logits, 0.0) - logits * y
                    + jnp.log1p(jnp.exp(-jnp.abs(logits))))
    return {"loss": loss, "rank_loss": loss,
            "rank_outputs": jax.nn.sigmoid(logits),
            "item_ar_loss": jnp.float32(0.0), "cate_ar_loss": jnp.float32(0.0)}


# ----------------------------------------------------------------------------
# Deterministic parameter init (mirrors DIN._init_weights shapes)
# ----------------------------------------------------------------------------
def init_params(key, dim, item_vocab, cate_vocab):
    D = dim
    H1, H2 = D // 2, D // 4                       # ActivationUnit fc_dims
    ks = jax.random.split(key, 8)

    def lin(k, fan_in, fan_out):                  # Linear: normal(0, 0.8), bias 0
        return 0.8 * jax.random.normal(k, (fan_in, fan_out), jnp.float32)

    return dict(
        item_emb=0.02 * jax.random.normal(ks[0], (item_vocab, D), jnp.float32),
        cate_emb=0.02 * jax.random.normal(ks[1], (cate_vocab, D), jnp.float32),
        # item_attention.active_unit  (cate_attention is unused in forward)
        w1=lin(ks[2], 8 * D, H1), b1=jnp.zeros((1, H1), jnp.float32),
        a1=jnp.zeros((1, H1), jnp.float32),
        w2=lin(ks[3], H1, H2), b2=jnp.zeros((1, H2), jnp.float32),
        a2=jnp.zeros((1, H2), jnp.float32),
        w3=0.8 * jax.random.normal(ks[4], (1, H2), jnp.float32),  # row vector
        b3=jnp.zeros((1, 1), jnp.float32),
        # top MLP: 4D -> 2D -> D -> 1
        m1=lin(ks[5], 4 * D, 2 * D), mb1=jnp.zeros((1, 2 * D), jnp.float32),
        m2=lin(ks[6], 2 * D, D), mb2=jnp.zeros((1, D), jnp.float32),
        m3=0.8 * jax.random.normal(ks[7], (1, D), jnp.float32),   # row vector
        mb3=jnp.zeros((1, 1), jnp.float32),
    )


if __name__ == "__main__":
    B, L, dim = 4, 8, 32
    item_vocab, cate_vocab = 50, 20

    key = jax.random.PRNGKey(0)
    kp, kd = jax.random.split(key)
    params = init_params(kp, dim, item_vocab, cate_vocab)

    k1, k2, k3, k4, k5 = jax.random.split(kd, 5)
    hist_item = jax.random.randint(k1, (B, L), 0, item_vocab)   # 0 == padding
    hist_cate = jax.random.randint(k2, (B, L), 0, cate_vocab)
    tgt_item = jax.random.randint(k3, (B,), 1, item_vocab)
    tgt_cate = jax.random.randint(k4, (B,), 1, cate_vocab)
    label = jax.random.bernoulli(k5, 0.5, (B,)).astype(jnp.float32)

    ref = reference_forward(params, hist_item, hist_cate, tgt_item, tgt_cate, label)

    # 1) exactness check: f32 compute path must match the PyTorch-faithful ref
    fwd_f32 = jax.jit(functools.partial(din_forward, params,
                                        compute_dtype=jnp.float32))
    out_f32 = fwd_f32(hist_item, hist_cate, tgt_item, tgt_cate, label)
    jax.block_until_ready(out_f32)
    np.testing.assert_allclose(np.asarray(out_f32["rank_outputs"]),
                               np.asarray(ref["rank_outputs"]),
                               rtol=1e-4, atol=1e-4)
    np.testing.assert_allclose(float(out_f32["loss"]), float(ref["loss"]),
                               rtol=1e-4, atol=1e-4)

    # 2) default perf path: bf16 operands / caches, f32 accumulation & stats
    #    (loose tolerance: bf16 operand / cache quantization)
    fwd = jax.jit(functools.partial(din_forward, params))
    out = fwd(hist_item, hist_cate, tgt_item, tgt_cate, label)
    jax.block_until_ready(out)
    np.testing.assert_allclose(np.asarray(out["rank_outputs"]),
                               np.asarray(ref["rank_outputs"]),
                               rtol=1e-1, atol=1e-1)
    np.testing.assert_allclose(float(out["loss"]), float(ref["loss"]),
                               rtol=1e-1, atol=1e-1)

    print("KERNEL_OK")
</pallas_src>

<mosaic_0001>
module attributes {stable_mosaic.version = 11 : i64} {
  func.func @_au_layer1_kernel(%arg0: i32, %arg1: memref<4x64xf32, #tpu.memory_space<vmem>>, %arg2: memref<4x8x64xf32, #tpu.memory_space<vmem>>, %arg3: memref<64x128xf32, #tpu.memory_space<vmem>>, %arg4: memref<128x128xf32, #tpu.memory_space<vmem>>, %arg5: memref<1x128xf32, #tpu.memory_space<vmem>>, %arg6: memref<4x8x16xf32, #tpu.memory_space<vmem>>, %arg7: memref<1x2x16xf32, #tpu.memory_space<vmem>>) attributes {dimension_semantics = [#tpu.dimension_semantics<parallel>], iteration_bounds = array<i64: 1>, scalar_prefetch = 0 : i64, scratch_operands = 0 : i64, tpu.core_type = #tpu.core_type<tc>, window_params = [{transform_indices = @transform_0, window_bounds = array<i64: 4, 64>}, {transform_indices = @transform_1, window_bounds = array<i64: 4, 8, 64>}, {pipeline_mode = #tpu.pipeline_mode<synchronous>, transform_indices = @transform_2, window_bounds = array<i64: 64, 128>}, {pipeline_mode = #tpu.pipeline_mode<synchronous>, transform_indices = @transform_3, window_bounds = array<i64: 128, 128>}, {pipeline_mode = #tpu.pipeline_mode<synchronous>, transform_indices = @transform_4, window_bounds = array<i64: 1, 128>}, {transform_indices = @transform_5, window_bounds = array<i64: 4, 8, 16>}, {transform_indices = @transform_6, window_bounds = array<i64: 1, 2, 16>}]} {
    %c0 = arith.constant 0 : index
    %c0_0 = arith.constant 0 : index
    %0 = vector.load %arg1[%c0, %c0_0] : memref<4x64xf32, #tpu.memory_space<vmem>>, vector<4x64xf32>
    %c0_1 = arith.constant 0 : index
    %c0_2 = arith.constant 0 : index
    %c0_3 = arith.constant 0 : index
    %1 = vector.load %arg2[%c0_1, %c0_2, %c0_3] : memref<4x8x64xf32, #tpu.memory_space<vmem>>, vector<4x8x64xf32>
    %2 = vector.shape_cast %0 : vector<4x64xf32> to vector<4x1x64xf32>
    %3 = vector.broadcast %2 : vector<4x1x64xf32> to vector<4x8x64xf32>
    %4 = arith.mulf %3, %1 : vector<4x8x64xf32>
    %5 = tpu.concatenate %1, %4 in 2 : vector<4x8x64xf32>, vector<4x8x64xf32> -> vector<4x8x128xf32>
    %6 = vector.shape_cast %5 : vector<4x8x128xf32> to vector<32x128xf32>
    %c0_4 = arith.constant 0 : index
    %c0_5 = arith.constant 0 : index
    %7 = vector.load %arg4[%c0_4, %c0_5] : memref<128x128xf32, #tpu.memory_space<vmem>>, vector<128x128xf32>
    %cst = arith.constant dense<0.000000e+00> : vector<32x128xf32>
    %8 = tpu.matmul %6, %7, %cst {dimension_numbers = #tpu.dot_dimension_numbers<[1], [0], [0], [1], [0, 0, 1, 1], [], []>} : vector<32x128xf32>, vector<128x128xf32>, vector<32x128xf32> -> vector<32x128xf32>
    %c0_6 = arith.constant 0 : index
    %c0_7 = arith.constant 0 : index
    %9 = vector.load %arg3[%c0_6, %c0_7] : memref<64x128xf32, #tpu.memory_space<vmem>>, vector<64x128xf32>
    %cst_8 = arith.constant dense<0.000000e+00> : vector<4x128xf32>
    %10 = tpu.matmul %0, %9, %cst_8 {dimension_numbers = #tpu.dot_dimension_numbers<[1], [0], [0], [1], [0, 0, 1, 1], [], []>} : vector<4x64xf32>, vector<64x128xf32>, vector<4x128xf32> -> vector<4x128xf32>
    %c0_9 = arith.constant 0 : index
    %c0_10 = arith.constant 0 : index
    %11 = vector.load %arg5[%c0_9, %c0_10] : memref<1x128xf32, #tpu.memory_space<vmem>>, vector<1x128xf32>
    %12 = vector.broadcast %11 : vector<1x128xf32> to vector<4x128xf32>
    %13 = arith.addf %10, %12 : vector<4x128xf32>
    %14 = vector.shape_cast %8 : vector<32x128xf32> to vector<4x8x128xf32>
    %15 = vector.shape_cast %13 : vector<4x128xf32> to vector<4x1x128xf32>
    %16 = vector.broadcast %15 : vector<4x1x128xf32> to vector<4x8x128xf32>
    %17 = arith.addf %14, %16 : vector<4x8x128xf32>
    %18 = vector.extract_strided_slice %17 {offsets = [0, 0, 0], sizes = [4, 8, 16], strides = [1, 1, 1]} : vector<4x8x128xf32> to vector<4x8x16xf32>
    %c0_11 = arith.constant 0 : index
    %c0_12 = arith.constant 0 : index
    %c0_13 = arith.constant 0 : index
    %19 = vector.load %arg6[%c0_11, %c0_12, %c0_13] : memref<4x8x16xf32, #tpu.memory_space<vmem>>, vector<4x8x16xf32>
    tpu.vector_store %arg6[%c0_11, %c0_12, %c0_13], %18 {strides = array<i32>} : memref<4x8x16xf32, #tpu.memory_space<vmem>>, vector<4x8x16xf32>,
    %20 = vector.shape_cast %18 : vector<4x8x16xf32> to vector<32x16xf32>
    %cst_14 = arith.constant dense<0.000000e+00> : vector<16xf32>
    %21 = vector.multi_reduction <add>, %20, %cst_14 [0] : vector<32x16xf32> to vector<16xf32>
    %22 = vector.shape_cast %21 : vector<16xf32> to vector<1x16xf32>
    %cst_15 = arith.constant 3.200000e+01 : f32
    %23 = vector.broadcast %cst_15 : f32 to vector<1x16xf32>
    %24 = arith.divf %22, %23 : vector<1x16xf32>
    %25 = vector.broadcast %24 : vector<1x16xf32> to vector<32x16xf32>
    %26 = arith.subf %20, %25 : vector<32x16xf32>
    %27 = arith.mulf %26, %26 : vector<32x16xf32>
    %cst_16 = arith.constant dense<0.000000e+00> : vector<16xf32>
    %28 = vector.multi_reduction <add>, %27, %cst_16 [0] : vector<32x16xf32> to vector<16xf32>
    %29 = vector.shape_cast %28 : vector<16xf32> to vector<1x16xf32>
    %30 = tpu.concatenate %22, %29 in 0 : vector<1x16xf32>, vector<1x16xf32> -> vector<2x16xf32>
    %31 = vector.shape_cast %30 : vector<2x16xf32> to vector<1x2x16xf32>
    %c0_17 = arith.constant 0 : index
    %c0_18 = arith.constant 0 : index
    %c0_19 = arith.constant 0 : index
    %32 = vector.load %arg7[%c0_17, %c0_18, %c0_19] : memref<1x2x16xf32, #tpu.memory_space<vmem>>, vector<1x2x16xf32>
    tpu.vector_store %arg7[%c0_17, %c0_18, %c0_19], %31 {strides = array<i32>} : memref<1x2x16xf32, #tpu.memory_space<vmem>>, vector<1x2x16xf32>,
    return
  }
  func.func @transform_0(%arg0: i32) -> (i32, i32) {
    %c0_i32 = arith.constant 0 : i32
    %c0_i32_0 = arith.constant 0 : i32
    return %arg0, %c0_i32 : i32, i32
  }
  func.func @transform_1(%arg0: i32) -> (i32, i32, i32) {
    %c0_i32 = arith.constant 0 : i32
    %c0_i32_0 = arith.constant 0 : i32
    %c0_i32_1 = arith.constant 0 : i32
    return %arg0, %c0_i32, %c0_i32_0 : i32, i32, i32
  }
  func.func @transform_2(%arg0: i32) -> (i32, i32) {
    %c0_i32 = arith.constant 0 : i32
    %c0_i32_0 = arith.constant 0 : i32
    %c0_i32_1 = arith.constant 0 : i32
    return %c0_i32, %c0_i32_0 : i32, i32
  }
  func.func @transform_3(%arg0: i32) -> (i32, i32) {
    %c0_i32 = arith.constant 0 : i32
    %c0_i32_0 = arith.constant 0 : i32
    %c0_i32_1 = arith.constant 0 : i32
    return %c0_i32, %c0_i32_0 : i32, i32
  }
  func.func @transform_4(%arg0: i32) -> (i32, i32) {
    %c0_i32 = arith.constant 0 : i32
    %c0_i32_0 = arith.constant 0 : i32
    %c0_i32_1 = arith.constant 0 : i32
    return %c0_i32, %c0_i32_0 : i32, i32
  }
  func.func @transform_5(%arg0: i32) -> (i32, i32, i32) {
    %c0_i32 = arith.constant 0 : i32
    %c0_i32_0 = arith.constant 0 : i32
    %c0_i32_1 = arith.constant 0 : i32
    return %arg0, %c0_i32, %c0_i32_0 : i32, i32, i32
  }
  func.func @transform_6(%arg0: i32) -> (i32, i32, i32) {
    %c0_i32 = arith.constant 0 : i32
    %c0_i32_0 = arith.constant 0 : i32
    %c0_i32_1 = arith.constant 0 : i32
    return %arg0, %c0_i32, %c0_i32_0 : i32, i32, i32
  }
}

module attributes {stable_mosaic.version = 11 : i64} {
  func.func @_au_layer2_kernel(%arg0: i32, %arg1: memref<4x8x16xf32, #tpu.memory_space<vmem>>, %arg2: memref<2x16xf32, #tpu.memory_space<vmem>>, %arg3: memref<1x16xf32, #tpu.memory_space<vmem>>, %arg4: memref<16x128xf32, #tpu.memory_space<vmem>>, %arg5: memref<1x128xf32, #tpu.memory_space<vmem>>, %arg6: memref<4x8x8xf32, #tpu.memory_space<vmem>>, %arg7: memref<1x2x8xf32, #tpu.memory_space<vmem>>) attributes {dimension_semantics = [#tpu.dimension_semantics<parallel>], iteration_bounds = array<i64: 1>, scalar_prefetch = 0 : i64, scratch_operands = 0 : i64, tpu.core_type = #tpu.core_type<tc>, window_params = [{transform_indices = @transform_0, window_bounds = array<i64: 4, 8, 16>}, {pipeline_mode = #tpu.pipeline_mode<synchronous>, transform_indices = @transform_1, window_bounds = array<i64: 2, 16>}, {pipeline_mode = #tpu.pipeline_mode<synchronous>, transform_indices = @transform_2, window_bounds = array<i64: 1, 16>}, {pipeline_mode = #tpu.pipeline_mode<synchronous>, transform_indices = @transform_3, window_bounds = array<i64: 16, 128>}, {pipeline_mode = #tpu.pipeline_mode<synchronous>, transform_indices = @transform_4, window_bounds = array<i64: 1, 128>}, {transform_indices = @transform_5, window_bounds = array<i64: 4, 8, 8>}, {transform_indices = @transform_6, window_bounds = array<i64: 1, 2, 8>}]} {
    %c0 = arith.constant 0 : index
    %c0_0 = arith.constant 0 : index
    %c0_1 = arith.constant 0 : index
    %0 = vector.load %arg1[%c0, %c0_0, %c0_1] : memref<4x8x16xf32, #tpu.memory_space<vmem>>, vector<4x8x16xf32>
    %1 = vector.shape_cast %0 : vector<4x8x16xf32> to vector<32x16xf32>
    %c0_2 = arith.constant 0 : index
    %c0_3 = arith.constant 0 : index
    %2 = vector.load %arg3[%c0_2, %c0_3] : memref<1x16xf32, #tpu.memory_space<vmem>>, vector<1x16xf32>
    %c0_4 = arith.constant 0 : index
    %c0_5 = arith.constant 0 : index
    %3 = vector.load %arg2[%c0_4, %c0_5] : memref<2x16xf32, #tpu.memory_space<vmem>>, vector<1x16xf32>
    %4 = vector.broadcast %3 : vector<1x16xf32> to vector<32x16xf32>
    %5 = arith.subf %1, %4 : vector<32x16xf32>
    %c1 = arith.constant 1 : index
    %c0_6 = arith.constant 0 : index
    %6 = vector.load %arg2[%c1, %c0_6] : memref<2x16xf32, #tpu.memory_space<vmem>>, vector<1x16xf32>
    %7 = vector.broadcast %6 : vector<1x16xf32> to vector<32x16xf32>
    %8 = arith.mulf %5, %7 : vector<32x16xf32>
    %9 = arith.negf %8 : vector<32x16xf32>
    %10 = math.exp %9 : vector<32x16xf32>
    %cst = arith.constant 1.000000e+00 : f32
    %11 = vector.broadcast %cst : f32 to vector<32x16xf32>
    %12 = arith.addf %11, %10 : vector<32x16xf32>
    %13 = arith.divf %11, %12 : vector<32x16xf32>
    %cst_7 = arith.constant 1.000000e+00 : f32
    %14 = vector.broadcast %cst_7 : f32 to vector<1x16xf32>
    %15 = arith.subf %14, %2 : vector<1x16xf32>
    %16 = vector.broadcast %15 : vector<1x16xf32> to vector<32x16xf32>
    %17 = arith.mulf %16, %13 : vector<32x16xf32>
    %18 = vector.broadcast %2 : vector<1x16xf32> to vector<32x16xf32>
    %19 = arith.addf %18, %17 : vector<32x16xf32>
    %20 = arith.mulf %1, %19 : vector<32x16xf32>
    %c0_8 = arith.constant 0 : index
    %c0_9 = arith.constant 0 : index
    %21 = vector.load %arg4[%c0_8, %c0_9] : memref<16x128xf32, #tpu.memory_space<vmem>>, vector<16x128xf32>
    %cst_10 = arith.constant dense<0.000000e+00> : vector<32x128xf32>
    %22 = tpu.matmul %20, %21, %cst_10 {dimension_numbers = #tpu.dot_dimension_numbers<[1], [0], [0], [1], [0, 0, 1, 1], [], []>} : vector<32x16xf32>, vector<16x128xf32>, vector<32x128xf32> -> vector<32x128xf32>
    %c0_11 = arith.constant 0 : index
    %c0_12 = arith.constant 0 : index
    %23 = vector.load %arg5[%c0_11, %c0_12] : memref<1x128xf32, #tpu.memory_space<vmem>>, vector<1x128xf32>
    %24 = vector.broadcast %23 : vector<1x128xf32> to vector<32x128xf32>
    %25 = arith.addf %22, %24 : vector<32x128xf32>
    %26 = vector.extract_strided_slice %25 {offsets = [0, 0], sizes = [32, 8], strides = [1, 1]} : vector<32x128xf32> to vector<32x8xf32>
    %27 = vector.shape_cast %26 : vector<32x8xf32> to vector<4x8x8xf32>
    %c0_13 = arith.constant 0 : index
    %c0_14 = arith.constant 0 : index
    %c0_15 = arith.constant 0 : index
    %28 = vector.load %arg6[%c0_13, %c0_14, %c0_15] : memref<4x8x8xf32, #tpu.memory_space<vmem>>, vector<4x8x8xf32>
    tpu.vector_store %arg6[%c0_13, %c0_14, %c0_15], %27 {strides = array<i32>} : memref<4x8x8xf32, #tpu.memory_space<vmem>>, vector<4x8x8xf32>,
    %cst_16 = arith.constant dense<0.000000e+00> : vector<8xf32>
    %29 = vector.multi_reduction <add>, %26, %cst_16 [0] : vector<32x8xf32> to vector<8xf32>
    %30 = vector.shape_cast %29 : vector<8xf32> to vector<1x8xf32>
    %cst_17 = arith.constant 3.200000e+01 : f32
    %31 = vector.broadcast %cst_17 : f32 to vector<1x8xf32>
    %32 = arith.divf %30, %31 : vector<1x8xf32>
    %33 = vector.broadcast %32 : vector<1x8xf32> to vector<32x8xf32>
    %34 = arith.subf %26, %33 : vector<32x8xf32>
    %35 = arith.mulf %34, %34 : vector<32x8xf32>
    %cst_18 = arith.constant dense<0.000000e+00> : vector<8xf32>
    %36 = vector.multi_reduction <add>, %35, %cst_18 [0] : vector<32x8xf32> to vector<8xf32>
    %37 = vector.shape_cast %36 : vector<8xf32> to vector<1x8xf32>
    %38 = tpu.concatenate %30, %37 in 0 : vector<1x8xf32>, vector<1x8xf32> -> vector<2x8xf32>
    %39 = vector.shape_cast %38 : vector<2x8xf32> to vector<1x2x8xf32>
    %c0_19 = arith.constant 0 : index
    %c0_20 = arith.constant 0 : index
    %c0_21 = arith.constant 0 : index
    %40 = vector.load %arg7[%c0_19, %c0_20, %c0_21] : memref<1x2x8xf32, #tpu.memory_space<vmem>>, vector<1x2x8xf32>
    tpu.vector_store %arg7[%c0_19, %c0_20, %c0_21], %39 {strides = array<i32>} : memref<1x2x8xf32, #tpu.memory_space<vmem>>, vector<1x2x8xf32>,
    return
  }
  func.func @transform_0(%arg0: i32) -> (i32, i32, i32) {
    %c0_i32 = arith.constant 0 : i32
    %c0_i32_0 = arith.constant 0 : i32
    %c0_i32_1 = arith.constant 0 : i32
    return %arg0, %c0_i32, %c0_i32_0 : i32, i32, i32
  }
  func.func @transform_1(%arg0: i32) -> (i32, i32) {
    %c0_i32 = arith.constant 0 : i32
    %c0_i32_0 = arith.constant 0 : i32
    %c0_i32_1 = arith.constant 0 : i32
    return %c0_i32, %c0_i32_0 : i32, i32
  }
  func.func @transform_2(%arg0: i32) -> (i32, i32) {
    %c0_i32 = arith.constant 0 : i32
    %c0_i32_0 = arith.constant 0 : i32
    %c0_i32_1 = arith.constant 0 : i32
    return %c0_i32, %c0_i32_0 : i32, i32
  }
  func.func @transform_3(%arg0: i32) -> (i32, i32) {
    %c0_i32 = arith.constant 0 : i32
    %c0_i32_0 = arith.constant 0 : i32
    %c0_i32_1 = arith.constant 0 : i32
    return %c0_i32, %c0_i32_0 : i32, i32
  }
  func.func @transform_4(%arg0: i32) -> (i32, i32) {
    %c0_i32 = arith.constant 0 : i32
    %c0_i32_0 = arith.constant 0 : i32
    %c0_i32_1 = arith.constant 0 : i32
    return %c0_i32, %c0_i32_0 : i32, i32
  }
  func.func @transform_5(%arg0: i32) -> (i32, i32, i32) {
    %c0_i32 = arith.constant 0 : i32
    %c0_i32_0 = arith.constant 0 : i32
    %c0_i32_1 = arith.constant 0 : i32
    return %arg0, %c0_i32, %c0_i32_0 : i32, i32, i32
  }
  func.func @transform_6(%arg0: i32) -> (i32, i32, i32) {
    %c0_i32 = arith.constant 0 : i32
    %c0_i32_0 = arith.constant 0 : i32
    %c0_i32_1 = arith.constant 0 : i32
    return %arg0, %c0_i32, %c0_i32_0 : i32, i32, i32
  }
}

module attributes {stable_mosaic.version = 11 : i64} {
  func.func @_din_head_kernel(%arg0: i32, %arg1: memref<4x8x8xf32, #tpu.memory_space<vmem>>, %arg2: memref<2x8xf32, #tpu.memory_space<vmem>>, %arg3: memref<1x8xf32, #tpu.memory_space<vmem>>, %arg4: memref<1x8xf32, #tpu.memory_space<vmem>>, %arg5: memref<4x8xf32, #tpu.memory_space<vmem>>, %arg6: memref<4x8x64xf32, #tpu.memory_space<vmem>>, %arg7: memref<4x64xf32, #tpu.memory_space<vmem>>, %arg8: memref<64x128xf32, #tpu.memory_space<vmem>>, %arg9: memref<64x128xf32, #tpu.memory_space<vmem>>, %arg10: memref<1x128xf32, #tpu.memory_space<vmem>>, %arg11: memref<128x128xf32, #tpu.memory_space<vmem>>, %arg12: memref<1x128xf32, #tpu.memory_space<vmem>>, %arg13: memref<1x128xf32, #tpu.memory_space<vmem>>, %arg14: memref<1x1xf32, #tpu.memory_space<smem>>, %arg15: memref<1x1xf32, #tpu.memory_space<smem>>, %arg16: memref<4x1xf32, #tpu.memory_space<vmem>>) attributes {dimension_semantics = [#tpu.dimension_semantics<parallel>], iteration_bounds = array<i64: 1>, scalar_prefetch = 0 : i64, scratch_operands = 0 : i64, tpu.core_type = #tpu.core_type<tc>, window_params = [{transform_indices = @transform_0, window_bounds = array<i64: 4, 8, 8>}, {pipeline_mode = #tpu.pipeline_mode<synchronous>, transform_indices = @transform_1, window_bounds = array<i64: 2, 8>}, {pipeline_mode = #tpu.pipeline_mode<synchronous>, transform_indices = @transform_2, window_bounds = array<i64: 1, 8>}, {pipeline_mode = #tpu.pipeline_mode<synchronous>, transform_indices = @transform_3, window_bounds = array<i64: 1, 8>}, {transform_indices = @transform_4, window_bounds = array<i64: 4, 8>}, {transform_indices = @transform_5, window_bounds = array<i64: 4, 8, 64>}, {transform_indices = @transform_6, window_bounds = array<i64: 4, 64>}, {pipeline_mode = #tpu.pipeline_mode<synchronous>, transform_indices = @transform_7, window_bounds = array<i64: 64, 128>}, {pipeline_mode = #tpu.pipeline_mode<synchronous>, transform_indices = @transform_8, window_bounds = array<i64: 64, 128>}, {pipeline_mode = #tpu.pipeline_mode<synchronous>, transform_indices = @transform_9, window_bounds = array<i64: 1, 128>}, {pipeline_mode = #tpu.pipeline_mode<synchronous>, transform_indices = @transform_10, window_bounds = array<i64: 128, 128>}, {pipeline_mode = #tpu.pipeline_mode<synchronous>, transform_indices = @transform_11, window_bounds = array<i64: 1, 128>}, {pipeline_mode = #tpu.pipeline_mode<synchronous>, transform_indices = @transform_12, window_bounds = array<i64: 1, 128>}, {transform_indices = @transform_13, window_bounds = array<i64: 1, 1>}, {transform_indices = @transform_14, window_bounds = array<i64: 1, 1>}, {transform_indices = @transform_15, window_bounds = array<i64: 4, 1>}]} {
    %c0 = arith.constant 0 : index
    %c0_0 = arith.constant 0 : index
    %c0_1 = arith.constant 0 : index
    %0 = vector.load %arg1[%c0, %c0_0, %c0_1] : memref<4x8x8xf32, #tpu.memory_space<vmem>>, vector<4x8x8xf32>
    %c0_2 = arith.constant 0 : index
    %c0_3 = arith.constant 0 : index
    %1 = vector.load %arg3[%c0_2, %c0_3] : memref<1x8xf32, #tpu.memory_space<vmem>>, vector<1x8xf32>
    %c0_4 = arith.constant 0 : index
    %c0_5 = arith.constant 0 : index
    %2 = vector.load %arg2[%c0_4, %c0_5] : memref<2x8xf32, #tpu.memory_space<vmem>>, vector<1x8xf32>
    %3 = vector.shape_cast %2 : vector<1x8xf32> to vector<1x1x8xf32>
    %4 = vector.broadcast %3 : vector<1x1x8xf32> to vector<4x8x8xf32>
    %5 = arith.subf %0, %4 : vector<4x8x8xf32>
    %c1 = arith.constant 1 : index
    %c0_6 = arith.constant 0 : index
    %6 = vector.load %arg2[%c1, %c0_6] : memref<2x8xf32, #tpu.memory_space<vmem>>, vector<1x8xf32>
    %7 = vector.shape_cast %6 : vector<1x8xf32> to vector<1x1x8xf32>
    %8 = vector.broadcast %7 : vector<1x1x8xf32> to vector<4x8x8xf32>
    %9 = arith.mulf %5, %8 : vector<4x8x8xf32>
    %10 = arith.negf %9 : vector<4x8x8xf32>
    %11 = math.exp %10 : vector<4x8x8xf32>
    %cst = arith.constant 1.000000e+00 : f32
    %12 = vector.broadcast %cst : f32 to vector<4x8x8xf32>
    %13 = arith.addf %12, %11 : vector<4x8x8xf32>
    %14 = arith.divf %12, %13 : vector<4x8x8xf32>
    %cst_7 = arith.constant 1.000000e+00 : f32
    %15 = vector.broadcast %cst_7 : f32 to vector<1x8xf32>
    %16 = arith.subf %15, %1 : vector<1x8xf32>
    %17 = vector.shape_cast %16 : vector<1x8xf32> to vector<1x1x8xf32>
    %18 = vector.broadcast %17 : vector<1x1x8xf32> to vector<4x8x8xf32>
    %19 = arith.mulf %18, %14 : vector<4x8x8xf32>
    %20 = vector.shape_cast %1 : vector<1x8xf32> to vector<1x1x8xf32>
    %21 = vector.broadcast %20 : vector<1x1x8xf32> to vector<4x8x8xf32>
    %22 = arith.addf %21, %19 : vector<4x8x8xf32>
    %23 = arith.mulf %0, %22 : vector<4x8x8xf32>
    %c0_8 = arith.constant 0 : index
    %c0_9 = arith.constant 0 : index
    %24 = vector.load %arg4[%c0_8, %c0_9] : memref<1x8xf32, #tpu.memory_space<vmem>>, vector<1x8xf32>
    %25 = vector.shape_cast %24 : vector<1x8xf32> to vector<1x1x8xf32>
    %26 = vector.broadcast %25 : vector<1x1x8xf32> to vector<4x8x8xf32>
    %27 = arith.mulf %23, %26 : vector<4x8x8xf32>
    %cst_10 = arith.constant dense<0.000000e+00> : vector<4x8xf32>
    %28 = vector.multi_reduction <add>, %27, %cst_10 [2] : vector<4x8x8xf32> to vector<4x8xf32>
    %c0_11 = arith.constant 0 : index
    %c0_12 = arith.constant 0 : index
    %29 = memref.load %arg14[%c0_11, %c0_12] : memref<1x1xf32, #tpu.memory_space<smem>>
    %30 = vector.broadcast %29 : f32 to vector<4x8xf32>
    %31 = arith.addf %28, %30 : vector<4x8xf32>
    %c0_13 = arith.constant 0 : index
    %c0_14 = arith.constant 0 : index
    %32 = vector.load %arg5[%c0_13, %c0_14] : memref<4x8xf32, #tpu.memory_space<vmem>>, vector<4x8xf32>
    %cst_15 = arith.constant 1.000000e+00 : f32
    %33 = vector.broadcast %cst_15 : f32 to vector<4x8xf32>
    %34 = arith.subf %33, %32 : vector<4x8xf32>
    %cst_16 = arith.constant 1.000000e+09 : f32
    %35 = vector.broadcast %cst_16 : f32 to vector<4x8xf32>
    %36 = arith.mulf %34, %35 : vector<4x8xf32>
    %37 = arith.subf %31, %36 : vector<4x8xf32>
    %cst_17 = arith.constant dense<0xFF800000> : vector<4xf32>
    %38 = vector.multi_reduction <maximumf>, %37, %cst_17 [1] : vector<4x8xf32> to vector<4xf32>
    %39 = vector.shape_cast %38 : vector<4xf32> to vector<4x1xf32>
    %40 = vector.broadcast %39 : vector<4x1xf32> to vector<4x8xf32>
    %41 = arith.subf %37, %40 : vector<4x8xf32>
    %42 = math.exp %41 : vector<4x8xf32>
    %cst_18 = arith.constant dense<0.000000e+00> : vector<4xf32>
    %43 = vector.multi_reduction <add>, %42, %cst_18 [1] : vector<4x8xf32> to vector<4xf32>
    %44 = vector.shape_cast %43 : vector<4xf32> to vector<4x1xf32>
    %45 = vector.broadcast %44 : vector<4x1xf32> to vector<4x8xf32>
    %46 = arith.divf %42, %45 : vector<4x8xf32>
    %c0_19 = arith.constant 0 : index
    %c0_20 = arith.constant 0 : index
    %c0_21 = arith.constant 0 : index
    %47 = vector.load %arg6[%c0_19, %c0_20, %c0_21] : memref<4x8x64xf32, #tpu.memory_space<vmem>>, vector<4x8x64xf32>
    %48 = vector.shape_cast %46 : vector<4x8xf32> to vector<4x8x1xf32>
    %49 = vector.broadcast %48 : vector<4x8x1xf32> to vector<4x8x64xf32>
    %50 = arith.mulf %49, %47 : vector<4x8x64xf32>
    %cst_22 = arith.constant dense<0.000000e+00> : vector<4x64xf32>
    %51 = vector.multi_reduction <add>, %50, %cst_22 [1] : vector<4x8x64xf32> to vector<4x64xf32>
    %c0_23 = arith.constant 0 : index
    %c0_24 = arith.constant 0 : index
    %52 = vector.load %arg7[%c0_23, %c0_24] : memref<4x64xf32, #tpu.memory_space<vmem>>, vector<4x64xf32>
    %c0_25 = arith.constant 0 : index
    %c0_26 = arith.constant 0 : index
    %53 = vector.load %arg8[%c0_25, %c0_26] : memref<64x128xf32, #tpu.memory_space<vmem>>, vector<64x128xf32>
    %cst_27 = arith.constant dense<0.000000e+00> : vector<4x128xf32>
    %54 = tpu.matmul %51, %53, %cst_27 {dimension_numbers = #tpu.dot_dimension_numbers<[1], [0], [0], [1], [0, 0, 1, 1], [], []>} : vector<4x64xf32>, vector<64x128xf32>, vector<4x128xf32> -> vector<4x128xf32>
    %c0_28 = arith.constant 0 : index
    %c0_29 = arith.constant 0 : index
    %55 = vector.load %arg9[%c0_28, %c0_29] : memref<64x128xf32, #tpu.memory_space<vmem>>, vector<64x128xf32>
    %cst_30 = arith.constant dense<0.000000e+00> : vector<4x128xf32>
    %56 = tpu.matmul %52, %55, %cst_30 {dimension_numbers = #tpu.dot_dimension_numbers<[1], [0], [0], [1], [0, 0, 1, 1], [], []>} : vector<4x64xf32>, vector<64x128xf32>, vector<4x128xf32> -> vector<4x128xf32>
    %57 = arith.addf %54, %56 : vector<4x128xf32>
    %c0_31 = arith.constant 0 : index
    %c0_32 = arith.constant 0 : index
    %58 = vector.load %arg10[%c0_31, %c0_32] : memref<1x128xf32, #tpu.memory_space<vmem>>, vector<1x128xf32>
    %59 = vector.broadcast %58 : vector<1x128xf32> to vector<4x128xf32>
    %60 = arith.addf %57, %59 : vector<4x128xf32>
    %cst_33 = arith.constant 0.000000e+00 : f32
    %61 = vector.broadcast %cst_33 : f32 to vector<4x128xf32>
    %62 = arith.maximumf %60, %61 : vector<4x128xf32>
    %c0_34 = arith.constant 0 : index
    %c0_35 = arith.constant 0 : index
    %63 = vector.load %arg11[%c0_34, %c0_35] : memref<128x128xf32, #tpu.memory_space<vmem>>, vector<128x128xf32>
    %cst_36 = arith.constant dense<0.000000e+00> : vector<4x128xf32>
    %64 = tpu.matmul %62, %63, %cst_36 {dimension_numbers = #tpu.dot_dimension_numbers<[1], [0], [0], [1], [0, 0, 1, 1], [], []>} : vector<4x128xf32>, vector<128x128xf32>, vector<4x128xf32> -> vector<4x128xf32>
    %c0_37 = arith.constant 0 : index
    %c0_38 = arith.constant 0 : index
    %65 = vector.load %arg12[%c0_37, %c0_38] : memref<1x128xf32, #tpu.memory_space<vmem>>, vector<1x128xf32>
    %66 = vector.broadcast %65 : vector<1x128xf32> to vector<4x128xf32>
    %67 = arith.addf %64, %66 : vector<4x128xf32>
    %cst_39 = arith.constant 0.000000e+00 : f32
    %68 = vector.broadcast %cst_39 : f32 to vector<4x128xf32>
    %69 = arith.maximumf %67, %68 : vector<4x128xf32>
    %c0_40 = arith.constant 0 : index
    %c0_41 = arith.constant 0 : index
    %70 = vector.load %arg13[%c0_40, %c0_41] : memref<1x128xf32, #tpu.memory_space<vmem>>, vector<1x128xf32>
    %71 = vector.broadcast %70 : vector<1x128xf32> to vector<4x128xf32>
    %72 = arith.mulf %69, %71 : vector<4x128xf32>
    %cst_42 = arith.constant dense<0.000000e+00> : vector<4xf32>
    %73 = vector.multi_reduction <add>, %72, %cst_42 [1] : vector<4x128xf32> to vector<4xf32>
    %74 = vector.shape_cast %73 : vector<4xf32> to vector<4x1xf32>
    %c0_43 = arith.constant 0 : index
    %c0_44 = arith.constant 0 : index
    %75 = memref.load %arg15[%c0_43, %c0_44] : memref<1x1xf32, #tpu.memory_space<smem>>
    %76 = vector.broadcast %75 : f32 to vector<4x1xf32>
    %77 = arith.addf %74, %76 : vector<4x1xf32>
    %c0_45 = arith.constant 0 : index
    %c0_46 = arith.constant 0 : index
    %78 = vector.load %arg16[%c0_45, %c0_46] : memref<4x1xf32, #tpu.memory_space<vmem>>, vector<4x1xf32>
    tpu.vector_store %arg16[%c0_45, %c0_46], %77 {strides = array<i32>} : memref<4x1xf32, #tpu.memory_space<vmem>>, vector<4x1xf32>,
    return
  }
  func.func @transform_0(%arg0: i32) -> (i32, i32, i32) {
    %c0_i32 = arith.constant 0 : i32
    %c0_i32_0 = arith.constant 0 : i32
    %c0_i32_1 = arith.constant 0 : i32
    return %arg0, %c0_i32, %c0_i32_0 : i32, i32, i32
  }
  func.func @transform_1(%arg0: i32) -> (i32, i32) {
    %c0_i32 = arith.constant 0 : i32
    %c0_i32_0 = arith.constant 0 : i32
    %c0_i32_1 = arith.constant 0 : i32
    return %c0_i32, %c0_i32_0 : i32, i32
  }
  func.func @transform_2(%arg0: i32) -> (i32, i32) {
    %c0_i32 = arith.constant 0 : i32
    %c0_i32_0 = arith.constant 0 : i32
    %c0_i32_1 = arith.constant 0 : i32
    return %c0_i32, %c0_i32_0 : i32, i32
  }
  func.func @transform_3(%arg0: i32) -> (i32, i32) {
    %c0_i32 = arith.constant 0 : i32
    %c0_i32_0 = arith.constant 0 : i32
    %c0_i32_1 = arith.constant 0 : i32
    return %c0_i32, %c0_i32_0 : i32, i32
  }
  func.func @transform_4(%arg0: i32) -> (i32, i32) {
    %c0_i32 = arith.constant 0 : i32
    %c0_i32_0 = arith.constant 0 : i32
    return %arg0, %c0_i32 : i32, i32
  }
  func.func @transform_5(%arg0: i32) -> (i32, i32, i32) {
    %c0_i32 = arith.constant 0 : i32
    %c0_i32_0 = arith.constant 0 : i32
    %c0_i32_1 = arith.constant 0 : i32
    return %arg0, %c0_i32, %c0_i32_0 : i32, i32, i32
  }
  func.func @transform_6(%arg0: i32) -> (i32, i32) {
    %c0_i32 = arith.constant 0 : i32
    %c0_i32_0 = arith.constant 0 : i32
    return %arg0, %c0_i32 : i32, i32
  }
  func.func @transform_7(%arg0: i32) -> (i32, i32) {
    %c0_i32 = arith.constant 0 : i32
    %c0_i32_0 = arith.constant 0 : i32
    %c0_i32_1 = arith.constant 0 : i32
    return %c0_i32, %c0_i32_0 : i32, i32
  }
  func.func @transform_8(%arg0: i32) -> (i32, i32) {
    %c0_i32 = arith.constant 0 : i32
    %c0_i32_0 = arith.constant 0 : i32
    %c0_i32_1 = arith.constant 0 : i32
    return %c0_i32, %c0_i32_0 : i32, i32
  }
  func.func @transform_9(%arg0: i32) -> (i32, i32) {
    %c0_i32 = arith.constant 0 : i32
    %c0_i32_0 = arith.constant 0 : i32
    %c0_i32_1 = arith.constant 0 : i32
    return %c0_i32, %c0_i32_0 : i32, i32
  }
  func.func @transform_10(%arg0: i32) -> (i32, i32) {
    %c0_i32 = arith.constant 0 : i32
    %c0_i32_0 = arith.constant 0 : i32
    %c0_i32_1 = arith.constant 0 : i32
    return %c0_i32, %c0_i32_0 : i32, i32
  }
  func.func @transform_11(%arg0: i32) -> (i32, i32) {
    %c0_i32 = arith.constant 0 : i32
    %c0_i32_0 = arith.constant 0 : i32
    %c0_i32_1 = arith.constant 0 : i32
    return %c0_i32, %c0_i32_0 : i32, i32
  }
  func.func @transform_12(%arg0: i32) -> (i32, i32) {
    %c0_i32 = arith.constant 0 : i32
    %c0_i32_0 = arith.constant 0 : i32
    %c0_i32_1 = arith.constant 0 : i32
    return %c0_i32, %c0_i32_0 : i32, i32
  }
  func.func @transform_13(%arg0: i32) -> (i32, i32) {
    %c0_i32 = arith.constant 0 : i32
    %c0_i32_0 = arith.constant 0 : i32
    %c0_i32_1 = arith.constant 0 : i32
    return %c0_i32, %c0_i32_0 : i32, i32
  }
  func.func @transform_14(%arg0: i32) -> (i32, i32) {
    %c0_i32 = arith.constant 0 : i32
    %c0_i32_0 = arith.constant 0 : i32
    %c0_i32_1 = arith.constant 0 : i32
    return %c0_i32, %c0_i32_0 : i32, i32
  }
  func.func @transform_15(%arg0: i32) -> (i32, i32) {
    %c0_i32 = arith.constant 0 : i32
    %c0_i32_0 = arith.constant 0 : i32
    return %arg0, %c0_i32 : i32, i32
  }
}

</mosaic_0001>

<llo_original>
// kernel: din_forward.3
$region0: #{din_forward.3}
  #allocation0 [shape = 'u32[]', space=smem, size = 0x4, offset = 0x4, fixed_abs, tag = 'smem constant byte address 0x4 - core index']
  #allocation1 [shape = 'u32[72,128]{1,0:T(1,128)}', space=vmem, size = 0x9000, scoped, tag = 'internal scratch']
  %s0 = inlined_call_operand.vmem [shape: f32[4,64], index: 0, kind: input, shape index: {}]
  %s1 = inlined_call_operand.vmem [shape: f32[4,8,64], index: 1, kind: input, shape index: {}]
  %s2 = inlined_call_operand.vmem [shape: f32[64,128], index: 2, kind: input, shape index: {}]
  %s3 = inlined_call_operand.vmem [shape: f32[128,128], index: 3, kind: input, shape index: {}]
  %s4 = inlined_call_operand.vmem [shape: f32[1,128], index: 4, kind: input, shape index: {}]
  %s5 = inlined_call_operand.vmem [shape: f32[4,8,16], index: 5, kind: output, shape index: {0}]
  %s6 = inlined_call_operand.vmem [shape: f32[1,2,16], index: 6, kind: output, shape index: {1}]
  %7 = xla_tuple %s5, %s6
  %s8 = sld [smem:[#allocation0]]
  $region38: #{din_forward.3} parent=0
    _
  %s10 = ssub.s32 1, %s8
  %s11 = scalar_select 0, %s10, %s8
  // Predicated region
  $region2: #{din_forward.3} parent=0 // pred_check
    _
  $region3: #{din_forward.3} parent=0 // pred_check_branch
    %13 = sbr.rel (0) target = $region5
  $region4: #{din_forward.3} parent=0 // pred_region
    _
  $region5: #{din_forward.3} parent=0 // pred_fallthru
    _
  // Predicated region
  $region6: #{din_forward.3} parent=0 // pred_check
    _
  $region7: #{din_forward.3} parent=0 // pred_check_branch
    %15 = sbr.rel (0) target = $region9
  $region8: #{din_forward.3} parent=0 // pred_region
    _
  $region9: #{din_forward.3} parent=0 // pred_fallthru
    _
  // Predicated region
  $region10: #{din_forward.3} parent=0 // pred_check
    _
  $region11: #{din_forward.3} parent=0 // pred_check_branch
    %17 = sbr.rel (0) target = $region13
  $region12: #{din_forward.3} parent=0 // pred_region
    _
  $region13: #{din_forward.3} parent=0 // pred_fallthru
    _
  // Predicated region
  $region14: #{din_forward.3} parent=0 // pred_check
    _
  $region15: #{din_forward.3} parent=0 // pred_check_branch
    %19 = sbr.rel (0) target = $region17
  $region16: #{din_forward.3} parent=0 // pred_region
    _
  $region17: #{din_forward.3} parent=0 // pred_fallthru
    _
  // Predicated region
  $region18: #{din_forward.3} parent=0 // pred_check
    _
  $region19: #{din_forward.3} parent=0 // pred_check_branch
    %21 = sbr.rel (0) target = $region21
  $region20: #{din_forward.3} parent=0 // pred_region
    _
  $region21: #{din_forward.3} parent=0 // pred_fallthru
    _
  %v22 = vld [vmem:[%s0] sm:$0xf]
  %v23 = vld [vmem:[%s1] sm:$0xff]
  %v24 = vld [vmem:[%s1 + $0x8] sm:$0xff]
  %v25 = vld [vmem:[%s1 + $0x10] sm:$0xff]
  %v26 = vld [vmem:[%s1 + $0x18] sm:$0xff]
  %v28 = vrot.slane %v22, 1
  %v29 = vrot.slane %v22, 2
  %v30 = vrot.slane %v22, 3
  %v31 = vperm.slane %v22, 0
  %v32 = vperm.slane %v28, 0
  %v33 = vperm.slane %v29, 0
  %v34 = vperm.slane %v30, 0
  %v39 = vmul.f32 %v31, %v23
  %v40 = vmul.f32 %v32, %v24
  %v41 = vmul.f32 %v33, %v25
  %v42 = vmul.f32 %v34, %v26
  %47 = vrot.lane.b32.xlu0 %v39, 64
  %v48 = vpop.permute.xlu0 %47
  %49 = vrot.lane.b32.xlu0 %v40, 64
  %v50 = vpop.permute.xlu0 %49
  %51 = vrot.lane.b32.xlu0 %v41, 64
  %v52 = vpop.permute.xlu0 %51
  %53 = vrot.lane.b32.xlu0 %v42, 64
  %v54 = vpop.permute.xlu0 %53
  %vm59 = vcmask 523264
  %v60 = vsel %vm59, %v23, %v48
  %v61 = vsel %vm59, %v24, %v50
  %v62 = vsel %vm59, %v25, %v52
  %v63 = vsel %vm59, %v26, %v54
  %v64 = vld [vmem:[%s3] sm:$0xff]
  %v65 = vld [vmem:[%s3 + $0x8] sm:$0xff]
  %v66 = vld [vmem:[%s3 + $0x10] sm:$0xff]
  %v67 = vld [vmem:[%s3 + $0x18] sm:$0xff]
  %v68 = vld [vmem:[%s3 + $0x20] sm:$0xff]
  %v69 = vld [vmem:[%s3 + $0x28] sm:$0xff]
  %v70 = vld [vmem:[%s3 + $0x30] sm:$0xff]
  %v71 = vld [vmem:[%s3 + $0x38] sm:$0xff]
  %v72 = vld [vmem:[%s3 + $0x40] sm:$0xff]
  %v73 = vld [vmem:[%s3 + $0x48] sm:$0xff]
  %v74 = vld [vmem:[%s3 + $0x50] sm:$0xff]
  %v75 = vld [vmem:[%s3 + $0x58] sm:$0xff]
  %v76 = vld [vmem:[%s3 + $0x60] sm:$0xff]
  %v77 = vld [vmem:[%s3 + $0x68] sm:$0xff]
  %v78 = vld [vmem:[%s3 + $0x70] sm:$0xff]
  %v79 = vld [vmem:[%s3 + $0x78] sm:$0xff]
  %80 = vmatpush.msra.mxu0 %v79
  %81 = vmatpush.msra.mxu0 %v78
  %82 = vmatpush.msra.mxu0 %v77
  %83 = vmatpush.msra.mxu0 %v76
  %84 = vmatpush.msra.mxu0 %v75
  %85 = vmatpush.msra.mxu0 %v74
  %86 = vmatpush.msra.mxu0 %v73
  %87 = vmatpush.msra.mxu0 %v72
  %88 = vmatpush.msra.mxu0 %v71
  %89 = vmatpush.msra.mxu0 %v70
  %90 = vmatpush.msra.mxu0 %v69
  %91 = vmatpush.msra.mxu0 %v68
  %92 = vmatpush.msra.mxu0 %v67
  %93 = vmatpush.msra.mxu0 %v66
  %94 = vmatpush.msra.mxu0 %v65
  %95 = vmatpush.msra.mxu0 %v64
  %96 = vmatmul.f32.gmra.mxu0 %v60
  %v97 = vpop.f32.mrf.mxu0
  %v98 = vadd.f32 0.0, %v97
  %99 = vmatmul.f32.gmra.mxu0 %v61
  %v100 = vpop.f32.mrf.mxu0
  %v101 = vadd.f32 0.0, %v100
  %102 = vmatmul.f32.gmra.mxu0 %v62
  %v103 = vpop.f32.mrf.mxu0
  %v104 = vadd.f32 0.0, %v103
  %105 = vmatmul.f32.gmra.mxu0 %v63
  %v106 = vpop.f32.mrf.mxu0
  %v107 = vadd.f32 0.0, %v106
  %108 = vdwg.mxu0
  %v109 = vld [vmem:[%s2] sm:$0xff]
  %v110 = vld [vmem:[%s2 + $0x8] sm:$0xff]
  %v111 = vld [vmem:[%s2 + $0x10] sm:$0xff]
  %v112 = vld [vmem:[%s2 + $0x18] sm:$0xff]
  %v113 = vld [vmem:[%s2 + $0x20] sm:$0xff]
  %v114 = vld [vmem:[%s2 + $0x28] sm:$0xff]
  %v115 = vld [vmem:[%s2 + $0x30] sm:$0xff]
  %v116 = vld [vmem:[%s2 + $0x38] sm:$0xff]
  %v117 = vld [vmem:[%s4] sm:$0x1]
  %v119 = vperm.slane %v117, 0
  %v121 = vsel %vm59, %v22, 0
  %123 = vmatpush.msra.mxu0 0.0
  %124 = vmatpush.msra.mxu0 0.0
  %125 = vmatpush.msra.mxu0 0.0
  %126 = vmatpush.msra.mxu0 0.0
  %127 = vmatpush.msra.mxu0 0.0
  %128 = vmatpush.msra.mxu0 0.0
  %129 = vmatpush.msra.mxu0 0.0
  %130 = vmatpush.msra.mxu0 0.0
  %131 = vmatpush.msra.mxu0 %v116
  %132 = vmatpush.msra.mxu0 %v115
  %133 = vmatpush.msra.mxu0 %v114
  %134 = vmatpush.msra.mxu0 %v113
  %135 = vmatpush.msra.mxu0 %v112
  %136 = vmatpush.msra.mxu0 %v111
  %137 = vmatpush.msra.mxu0 %v110
  %138 = vmatpush.msra.mxu0 %v109
  %139 = vmatmul.f32.gmra.mxu0 %v121
  %v140 = vpop.f32.mrf.mxu0
  %v141 = vadd.f32 %v119, %v140
  %142 = vdwg.mxu0
  %v144 = vrot.slane %v141, 1
  %v145 = vrot.slane %v141, 2
  %v146 = vrot.slane %v141, 3
  %v147 = vperm.slane %v141, 0
  %v148 = vperm.slane %v144, 0
  %v149 = vperm.slane %v145, 0
  %v150 = vperm.slane %v146, 0
  %v155 = vadd.f32 %v98, %v147
  %v156 = vadd.f32 %v101, %v148
  %v157 = vadd.f32 %v104, %v149
  %v158 = vadd.f32 %v107, %v150
  %vm159 = vcmask 130048
  %160 = vst.msk [vmem:[%s5] sm:$0xff] %vm159, %v155
  %161 = vst.msk [vmem:[%s5 + $0x8] sm:$0xff] %vm159, %v156
  %162 = vst.msk [vmem:[%s5 + $0x10] sm:$0xff] %vm159, %v157
  %163 = vst.msk [vmem:[%s5 + $0x18] sm:$0xff] %vm159, %v158
  %v164 = vsel %vm159, %v155, 0.0
  %v165 = vsel %vm159, %v156, 0.0
  %v166 = vadd.f32 %v164, %v165
  %v167 = vsel %vm159, %v157, 0.0
  %v168 = vadd.f32 %v166, %v167
  %v169 = vsel %vm159, %v158, 0.0
  %v170 = vadd.f32 %v168, %v169
  %v171 = vrot.slane %v170, 4
  %v172 = vadd.f32 %v170, %v171
  %v173 = vrot.slane %v172, 2
  %v174 = vadd.f32 %v172, %v173
  %v175 = vrot.slane %v174, 1
  %v176 = vadd.f32 %v174, %v175
  %v177 = vrcp.pop 32.0
  %v178 = vmul.f32 32.0, %v177
  %v179 = vsub.f32 1.0, %v178
  %v180 = vmul.f32 %v177, %v179
  %v181 = vadd.f32 %v177, %v180
  %vm182 = vweird.f32 %v177
  %v183 = vsel %vm182, %v177, %v181
  %v184 = vmul.f32 %v176, %v183
  %v185 = vsub.f32 %v155, %v184
  %v186 = vsub.f32 %v156, %v184
  %v187 = vsub.f32 %v157, %v184
  %v188 = vsub.f32 %v158, %v184
  %v189 = vmul.f32 %v185, %v185
  %v190 = vmul.f32 %v186, %v186
  %v191 = vmul.f32 %v187, %v187
  %v192 = vmul.f32 %v188, %v188
  %v193 = vsel %vm159, %v189, 0.0
  %v194 = vsel %vm159, %v190, 0.0
  %v195 = vadd.f32 %v193, %v194
  %v196 = vsel %vm159, %v191, 0.0
  %v197 = vadd.f32 %v195, %v196
  %v198 = vsel %vm159, %v192, 0.0
  %v199 = vadd.f32 %v197, %v198
  %v200 = vrot.slane %v199, 4
  %v201 = vadd.f32 %v199, %v200
  %v202 = vrot.slane %v201, 2
  %v203 = vadd.f32 %v201, %v202
  %v204 = vrot.slane %v203, 1
  %v205 = vadd.f32 %v203, %v204
  %vm206 = vcmask 1040384
  %v207 = vsel %vm206, %v176, %v205
  %vm208 = vcmask 123904
  %209 = vst.msk [vmem:[%s6] sm:$0x3] %vm208, %v207
  // Predicated region
  $region22: #{din_forward.3} parent=0 // pred_check
    _
  $region23: #{din_forward.3} parent=0 // pred_check_branch
    %211 = sbr.rel (0) target = $region25
  $region24: #{din_forward.3} parent=0 // pred_region
    _
  $region25: #{din_forward.3} parent=0 // pred_fallthru
    _
  // Predicated region
  $region26: #{din_forward.3} parent=0 // pred_check
    _
  $region27: #{din_forward.3} parent=0 // pred_check_branch
    %213 = sbr.rel (0) target = $region29
  $region28: #{din_forward.3} parent=0 // pred_region
    _
  $region29: #{din_forward.3} parent=0 // pred_fallthru
    _
  // Predicated region
  $region30: #{din_forward.3} parent=0 // pred_check
    _
  $region31: #{din_forward.3} parent=0 // pred_check_branch
    %215 = sbr.rel (0) target = $region33
  $region32: #{din_forward.3} parent=0 // pred_region
    _
  $region33: #{din_forward.3} parent=0 // pred_fallthru
    _
  // Predicated region
  $region34: #{din_forward.3} parent=0 // pred_check
    _
  $region35: #{din_forward.3} parent=0 // pred_check_branch
    %217 = sbr.rel (0) target = $region37
  $region36: #{din_forward.3} parent=0 // pred_region
    _
  $region37: #{din_forward.3} parent=0 // pred_fallthru
    _

// kernel: din_forward.4
$region0: #{din_forward.4}
  #allocation0 [shape = 'u32[]', space=smem, size = 0x4, offset = 0x4, fixed_abs, tag = 'smem constant byte address 0x4 - core index']
  #allocation1 [shape = 'u32[72,128]{1,0:T(1,128)}', space=vmem, size = 0x9000, scoped, tag = 'internal scratch']
  %s0 = inlined_call_operand.vmem [shape: f32[4,8,16], index: 0, kind: input, shape index: {}]
  %s1 = inlined_call_operand.vmem [shape: f32[2,16], index: 1, kind: input, shape index: {}]
  %s2 = inlined_call_operand.vmem [shape: f32[1,16], index: 2, kind: input, shape index: {}]
  %s3 = inlined_call_operand.vmem [shape: f32[16,128], index: 3, kind: input, shape index: {}]
  %s4 = inlined_call_operand.vmem [shape: f32[1,128], index: 4, kind: input, shape index: {}]
  %s5 = inlined_call_operand.vmem [shape: f32[4,8,8], index: 5, kind: output, shape index: {0}]
  %s6 = inlined_call_operand.vmem [shape: f32[1,2,8], index: 6, kind: output, shape index: {1}]
  %7 = xla_tuple %s5, %s6
  %s8 = sld [smem:[#allocation0]]
  $region38: #{din_forward.4} parent=0
    _
  %s10 = ssub.s32 1, %s8
  %s11 = scalar_select 0, %s10, %s8
  // Predicated region
  $region2: #{din_forward.4} parent=0 // pred_check
    _
  $region3: #{din_forward.4} parent=0 // pred_check_branch
    %13 = sbr.rel (0) target = $region5
  $region4: #{din_forward.4} parent=0 // pred_region
    _
  $region5: #{din_forward.4} parent=0 // pred_fallthru
    _
  // Predicated region
  $region6: #{din_forward.4} parent=0 // pred_check
    _
  $region7: #{din_forward.4} parent=0 // pred_check_branch
    %15 = sbr.rel (0) target = $region9
  $region8: #{din_forward.4} parent=0 // pred_region
    _
  $region9: #{din_forward.4} parent=0 // pred_fallthru
    _
  // Predicated region
  $region10: #{din_forward.4} parent=0 // pred_check
    _
  $region11: #{din_forward.4} parent=0 // pred_check_branch
    %17 = sbr.rel (0) target = $region13
  $region12: #{din_forward.4} parent=0 // pred_region
    _
  $region13: #{din_forward.4} parent=0 // pred_fallthru
    _
  // Predicated region
  $region14: #{din_forward.4} parent=0 // pred_check
    _
  $region15: #{din_forward.4} parent=0 // pred_check_branch
    %19 = sbr.rel (0) target = $region17
  $region16: #{din_forward.4} parent=0 // pred_region
    _
  $region17: #{din_forward.4} parent=0 // pred_fallthru
    _
  // Predicated region
  $region18: #{din_forward.4} parent=0 // pred_check
    _
  $region19: #{din_forward.4} parent=0 // pred_check_branch
    %21 = sbr.rel (0) target = $region21
  $region20: #{din_forward.4} parent=0 // pred_region
    _
  $region21: #{din_forward.4} parent=0 // pred_fallthru
    _
  %v22 = vld [vmem:[%s0] sm:$0xff]
  %v23 = vld [vmem:[%s0 + $0x8] sm:$0xff]
  %v24 = vld [vmem:[%s0 + $0x10] sm:$0xff]
  %v25 = vld [vmem:[%s0 + $0x18] sm:$0xff]
  %v26 = vld [vmem:[%s2] sm:$0x1]
  %v27 = vld [vmem:[%s1] sm:$0x1]
  %v28 = vperm.slane %v27, 0
  %v29 = vsub.f32 %v22, %v28
  %v30 = vsub.f32 %v23, %v28
  %v31 = vsub.f32 %v24, %v28
  %v32 = vsub.f32 %v25, %v28
  %v33 = vld [vmem:[%s1 + $0x1] sm:$0x1]
  %v34 = vperm.slane %v33, 0
  %v35 = vmul.f32 %v29, %v34
  %v36 = vmul.f32 %v30, %v34
  %v37 = vmul.f32 %v31, %v34
  %v38 = vmul.f32 %v32, %v34
  %v39 = vxor.u32 %v35, 2147483648
  %v40 = vxor.u32 %v36, 2147483648
  %v41 = vxor.u32 %v37, 2147483648
  %v42 = vxor.u32 %v38, 2147483648
  %v43 = vmul.f32 %v39, 1.442695
  %v44 = vpow.pop %v43
  %v45 = vmul.f32 %v40, 1.442695
  %v46 = vpow.pop %v45
  %v47 = vmul.f32 %v41, 1.442695
  %v48 = vpow.pop %v47
  %v49 = vmul.f32 %v42, 1.442695
  %v50 = vpow.pop %v49
  %v51 = vadd.f32 %v44, 1.0
  %v52 = vadd.f32 %v46, 1.0
  %v53 = vadd.f32 %v48, 1.0
  %v54 = vadd.f32 %v50, 1.0
  %v55 = vrcp.pop %v51
  %v56 = vmul.f32 %v51, %v55
  %v57 = vsub.f32 1.0, %v56
  %v58 = vmul.f32 %v55, %v57
  %v59 = vadd.f32 %v55, %v58
  %vm60 = vweird.f32 %v51
  %vm61 = vweird.f32 %v55
  %vm62 = vmor %vm60, %vm61
  %v63 = vsel %vm62, %v55, %v59
  %v64 = vand.u32 2147483647, %v51
  %vm65 = vcmp.eq.f32.partialorder %v64, 8.507059e+37
  %v66 = vand.u32 %v51, 2147483648
  %v67 = vor.u32 1.1754944e-38, %v66
  %v68 = vsel %vm65, %v67, %v63
  %v69 = vmul.f32 1.0, %v68
  %v70 = vrcp.pop %v52
  %v71 = vmul.f32 %v52, %v70
  %v72 = vsub.f32 1.0, %v71
  %v73 = vmul.f32 %v70, %v72
  %v74 = vadd.f32 %v70, %v73
  %vm75 = vweird.f32 %v52
  %vm76 = vweird.f32 %v70
  %vm77 = vmor %vm75, %vm76
  %v78 = vsel %vm77, %v70, %v74
  %v79 = vand.u32 2147483647, %v52
  %vm80 = vcmp.eq.f32.partialorder %v79, 8.507059e+37
  %v81 = vand.u32 %v52, 2147483648
  %v82 = vor.u32 1.1754944e-38, %v81
  %v83 = vsel %vm80, %v82, %v78
  %v84 = vmul.f32 1.0, %v83
  %v85 = vrcp.pop %v53
  %v86 = vmul.f32 %v53, %v85
  %v87 = vsub.f32 1.0, %v86
  %v88 = vmul.f32 %v85, %v87
  %v89 = vadd.f32 %v85, %v88
  %vm90 = vweird.f32 %v53
  %vm91 = vweird.f32 %v85
  %vm92 = vmor %vm90, %vm91
  %v93 = vsel %vm92, %v85, %v89
  %v94 = vand.u32 2147483647, %v53
  %vm95 = vcmp.eq.f32.partialorder %v94, 8.507059e+37
  %v96 = vand.u32 %v53, 2147483648
  %v97 = vor.u32 1.1754944e-38, %v96
  %v98 = vsel %vm95, %v97, %v93
  %v99 = vmul.f32 1.0, %v98
  %v100 = vrcp.pop %v54
  %v101 = vmul.f32 %v54, %v100
  %v102 = vsub.f32 1.0, %v101
  %v103 = vmul.f32 %v100, %v102
  %v104 = vadd.f32 %v100, %v103
  %vm105 = vweird.f32 %v54
  %vm106 = vweird.f32 %v100
  %vm107 = vmor %vm105, %vm106
  %v108 = vsel %vm107, %v100, %v104
  %v109 = vand.u32 2147483647, %v54
  %vm110 = vcmp.eq.f32.partialorder %v109, 8.507059e+37
  %v111 = vand.u32 %v54, 2147483648
  %v112 = vor.u32 1.1754944e-38, %v111
  %v113 = vsel %vm110, %v112, %v108
  %v114 = vmul.f32 1.0, %v113
  %v115 = vsub.f32 1.0, %v26
  %v117 = vperm.slane %v115, 0
  %v119 = vmul.f32 %v117, %v69
  %v120 = vmul.f32 %v117, %v84
  %v121 = vmul.f32 %v117, %v99
  %v122 = vmul.f32 %v117, %v114
  %v124 = vperm.slane %v26, 0
  %v126 = vadd.f32 %v124, %v119
  %v127 = vadd.f32 %v124, %v120
  %v128 = vadd.f32 %v124, %v121
  %v129 = vadd.f32 %v124, %v122
  %v130 = vmul.f32 %v22, %v126
  %v131 = vmul.f32 %v23, %v127
  %v132 = vmul.f32 %v24, %v128
  %v133 = vmul.f32 %v25, %v129
  %v134 = vld [vmem:[%s3] sm:$0xff]
  %v135 = vld [vmem:[%s3 + $0x8] sm:$0xff]
  %v136 = vld [vmem:[%s4] sm:$0x1]
  %v138 = vperm.slane %v136, 0
  %vm140 = vcmask 130048
  %v142 = vsel %vm140, %v130, 0
  %v145 = vsel %vm140, %v131, 0
  %v148 = vsel %vm140, %v132, 0
  %v151 = vsel %vm140, %v133, 0
  %153 = vmatpush.msra.mxu0 0.0
  %154 = vmatpush.msra.mxu0 0.0
  %155 = vmatpush.msra.mxu0 0.0
  %156 = vmatpush.msra.mxu0 0.0
  %157 = vmatpush.msra.mxu0 0.0
  %158 = vmatpush.msra.mxu0 0.0
  %159 = vmatpush.msra.mxu0 0.0
  %160 = vmatpush.msra.mxu0 0.0
  %161 = vmatpush.msra.mxu0 0.0
  %162 = vmatpush.msra.mxu0 0.0
  %163 = vmatpush.msra.mxu0 0.0
  %164 = vmatpush.msra.mxu0 0.0
  %165 = vmatpush.msra.mxu0 0.0
  %166 = vmatpush.msra.mxu0 0.0
  %167 = vmatpush.msra.mxu0 %v135
  %168 = vmatpush.msra.mxu0 %v134
  %169 = vmatmul.f32.gmra.mxu0 %v142
  %v170 = vpop.f32.mrf.mxu0
  %v171 = vadd.f32 %v138, %v170
  %172 = vmatmul.f32.gmra.mxu0 %v145
  %v173 = vpop.f32.mrf.mxu0
  %v174 = vadd.f32 %v138, %v173
  %175 = vmatmul.f32.gmra.mxu0 %v148
  %v176 = vpop.f32.mrf.mxu0
  %v177 = vadd.f32 %v138, %v176
  %178 = vmatmul.f32.gmra.mxu0 %v151
  %v179 = vpop.f32.mrf.mxu0
  %v180 = vadd.f32 %v138, %v179
  %181 = vdwg.mxu0
  %vm182 = vcmask 64512
  %183 = vst.msk [vmem:[%s5] sm:$0xff] %vm182, %v171
  %184 = vst.msk [vmem:[%s5 + $0x8] sm:$0xff] %vm182, %v174
  %185 = vst.msk [vmem:[%s5 + $0x10] sm:$0xff] %vm182, %v177
  %186 = vst.msk [vmem:[%s5 + $0x18] sm:$0xff] %vm182, %v180
  %v187 = vsel %vm182, %v171, 0.0
  %v188 = vsel %vm182, %v174, 0.0
  %v189 = vadd.f32 %v187, %v188
  %v190 = vsel %vm182, %v177, 0.0
  %v191 = vadd.f32 %v189, %v190
  %v192 = vsel %vm182, %v180, 0.0
  %v193 = vadd.f32 %v191, %v192
  %v194 = vrot.slane %v193, 4
  %v195 = vadd.f32 %v193, %v194
  %v196 = vrot.slane %v195, 2
  %v197 = vadd.f32 %v195, %v196
  %v198 = vrot.slane %v197, 1
  %v199 = vadd.f32 %v197, %v198
  %v200 = vrcp.pop 32.0
  %v201 = vmul.f32 32.0, %v200
  %v202 = vsub.f32 1.0, %v201
  %v203 = vmul.f32 %v200, %v202
  %v204 = vadd.f32 %v200, %v203
  %vm205 = vweird.f32 %v200
  %v206 = vsel %vm205, %v200, %v204
  %v207 = vmul.f32 %v199, %v206
  %v208 = vsub.f32 %v171, %v207
  %v209 = vsub.f32 %v174, %v207
  %v210 = vsub.f32 %v177, %v207
  %v211 = vsub.f32 %v180, %v207
  %v212 = vmul.f32 %v208, %v208
  %v213 = vmul.f32 %v209, %v209
  %v214 = vmul.f32 %v210, %v210
  %v215 = vmul.f32 %v211, %v211
  %v216 = vsel %vm182, %v212, 0.0
  %v217 = vsel %vm182, %v213, 0.0
  %v218 = vadd.f32 %v216, %v217
  %v219 = vsel %vm182, %v214, 0.0
  %v220 = vadd.f32 %v218, %v219
  %v221 = vsel %vm182, %v215, 0.0
  %v222 = vadd.f32 %v220, %v221
  %v223 = vrot.slane %v222, 4
  %v224 = vadd.f32 %v222, %v223
  %v225 = vrot.slane %v224, 2
  %v226 = vadd.f32 %v224, %v225
  %v227 = vrot.slane %v226, 1
  %v228 = vadd.f32 %v226, %v227
  %vm229 = vcmask 1040384
  %v230 = vsel %vm229, %v199, %v228
  %vm231 = vcmask 58368
  %232 = vst.msk [vmem:[%s6] sm:$0x3] %vm231, %v230
  // Predicated region
  $region22: #{din_forward.4} parent=0 // pred_check
    _
  $region23: #{din_forward.4} parent=0 // pred_check_branch
    %234 = sbr.rel (0) target = $region25
  $region24: #{din_forward.4} parent=0 // pred_region
    _
  $region25: #{din_forward.4} parent=0 // pred_fallthru
    _
  // Predicated region
  $region26: #{din_forward.4} parent=0 // pred_check
    _
  $region27: #{din_forward.4} parent=0 // pred_check_branch
    %236 = sbr.rel (0) target = $region29
  $region28: #{din_forward.4} parent=0 // pred_region
    _
  $region29: #{din_forward.4} parent=0 // pred_fallthru
    _
  // Predicated region
  $region30: #{din_forward.4} parent=0 // pred_check
    _
  $region31: #{din_forward.4} parent=0 // pred_check_branch
    %238 = sbr.rel (0) target = $region33
  $region32: #{din_forward.4} parent=0 // pred_region
    _
  $region33: #{din_forward.4} parent=0 // pred_fallthru
    _
  // Predicated region
  $region34: #{din_forward.4} parent=0 // pred_check
    _
  $region35: #{din_forward.4} parent=0 // pred_check_branch
    %240 = sbr.rel (0) target = $region37
  $region36: #{din_forward.4} parent=0 // pred_region
    _
  $region37: #{din_forward.4} parent=0 // pred_fallthru
    _

// kernel: din_forward.5
$region0: #{din_forward.5}
  #allocation0 [shape = 'u32[]', space=smem, size = 0x4, offset = 0x4, fixed_abs, tag = 'smem constant byte address 0x4 - core index']
  #allocation1 [shape = 'u32[72,128]{1,0:T(1,128)}', space=vmem, size = 0x9000, scoped, tag = 'internal scratch']
  #allocation2 [shape = 'f32[1,1]{1,0:T(1,128)S(6)}', space=smem, size = 0x200, scoped, tag = 'scoped memory for din_forward.5']
  #allocation3 [shape = 'f32[1,1]{1,0:T(1,128)S(6)}', space=smem, size = 0x200, scoped, tag = 'scoped memory for din_forward.5']
  %s0 = inlined_call_operand.vmem [shape: f32[4,8,8], index: 0, kind: input, shape index: {}]
  %s1 = inlined_call_operand.vmem [shape: f32[2,8], index: 1, kind: input, shape index: {}]
  %s2 = inlined_call_operand.vmem [shape: f32[1,8], index: 2, kind: input, shape index: {}]
  %s3 = inlined_call_operand.vmem [shape: f32[1,8], index: 3, kind: input, shape index: {}]
  %s4 = inlined_call_operand.vmem [shape: f32[4,8], index: 4, kind: input, shape index: {}]
  %s5 = inlined_call_operand.vmem [shape: f32[4,8,64], index: 5, kind: input, shape index: {}]
  %s6 = inlined_call_operand.vmem [shape: f32[4,64], index: 6, kind: input, shape index: {}]
  %s7 = inlined_call_operand.vmem [shape: f32[64,128], index: 7, kind: input, shape index: {}]
  %s8 = inlined_call_operand.vmem [shape: f32[64,128], index: 8, kind: input, shape index: {}]
  %s9 = inlined_call_operand.vmem [shape: f32[1,128], index: 9, kind: input, shape index: {}]
  %s10 = inlined_call_operand.vmem [shape: f32[128,128], index: 10, kind: input, shape index: {}]
  %s11 = inlined_call_operand.vmem [shape: f32[1,128], index: 11, kind: input, shape index: {}]
  %s12 = inlined_call_operand.vmem [shape: f32[1,128], index: 12, kind: input, shape index: {}]
  %s13 = inlined_call_operand.<no memory space> [shape: f32[1,1], index: 13, kind: input, shape index: {}, may-alias: {13,14}]
  %s14 = inlined_call_operand.<no memory space> [shape: f32[1,1], index: 14, kind: input, shape index: {}, may-alias: {13,14}]
  %s15 = inlined_call_operand.vmem [shape: f32[4,1], index: 15, kind: output, shape index: {}]
  %s16 = sld [smem:[#allocation0]]
  $region70: #{din_forward.5} parent=0
    _
  %s18 = ssub.s32 1, %s16
  %s19 = scalar_select 0, %s18, %s16
  %20 = sst [smem:[#allocation2]] %s13
  %21 = sst [smem:[#allocation3]] %s14
  // Predicated region
  $region2: #{din_forward.5} parent=0 // pred_check
    _
  $region3: #{din_forward.5} parent=0 // pred_check_branch
    %23 = sbr.rel (0) target = $region5
  $region4: #{din_forward.5} parent=0 // pred_region
    _
  $region5: #{din_forward.5} parent=0 // pred_fallthru
    _
  // Predicated region
  $region6: #{din_forward.5} parent=0 // pred_check
    _
  $region7: #{din_forward.5} parent=0 // pred_check_branch
    %25 = sbr.rel (0) target = $region9
  $region8: #{din_forward.5} parent=0 // pred_region
    _
  $region9: #{din_forward.5} parent=0 // pred_fallthru
    _
  // Predicated region
  $region10: #{din_forward.5} parent=0 // pred_check
    _
  $region11: #{din_forward.5} parent=0 // pred_check_branch
    %27 = sbr.rel (0) target = $region13
  $region12: #{din_forward.5} parent=0 // pred_region
    _
  $region13: #{din_forward.5} parent=0 // pred_fallthru
    _
  // Predicated region
  $region14: #{din_forward.5} parent=0 // pred_check
    _
  $region15: #{din_forward.5} parent=0 // pred_check_branch
    %29 = sbr.rel (0) target = $region17
  $region16: #{din_forward.5} parent=0 // pred_region
    _
  $region17: #{din_forward.5} parent=0 // pred_fallthru
    _
  // Predicated region
  $region18: #{din_forward.5} parent=0 // pred_check
    _
  $region19: #{din_forward.5} parent=0 // pred_check_branch
    %31 = sbr.rel (0) target = $region21
  $region20: #{din_forward.5} parent=0 // pred_region
    _
  $region21: #{din_forward.5} parent=0 // pred_fallthru
    _
  // Predicated region
  $region22: #{din_forward.5} parent=0 // pred_check
    _
  $region23: #{din_forward.5} parent=0 // pred_check_branch
    %33 = sbr.rel (0) target = $region25
  $region24: #{din_forward.5} parent=0 // pred_region
    _
  $region25: #{din_forward.5} parent=0 // pred_fallthru
    _
  // Predicated region
  $region26: #{din_forward.5} parent=0 // pred_check
    _
  $region27: #{din_forward.5} parent=0 // pred_check_branch
    %35 = sbr.rel (0) target = $region29
  $region28: #{din_forward.5} parent=0 // pred_region
    _
  $region29: #{din_forward.5} parent=0 // pred_fallthru
    _
  // Predicated region
  $region30: #{din_forward.5} parent=0 // pred_check
    _
  $region31: #{din_forward.5} parent=0 // pred_check_branch
    %37 = sbr.rel (0) target = $region33
  $region32: #{din_forward.5} parent=0 // pred_region
    _
  $region33: #{din_forward.5} parent=0 // pred_fallthru
    _
  // Predicated region
  $region34: #{din_forward.5} parent=0 // pred_check
    _
  $region35: #{din_forward.5} parent=0 // pred_check_branch
    %39 = sbr.rel (0) target = $region37
  $region36: #{din_forward.5} parent=0 // pred_region
    _
  $region37: #{din_forward.5} parent=0 // pred_fallthru
    _
  // Predicated region
  $region38: #{din_forward.5} parent=0 // pred_check
    _
  $region39: #{din_forward.5} parent=0 // pred_check_branch
    %41 = sbr.rel (0) target = $region41
  $region40: #{din_forward.5} parent=0 // pred_region
    _
  $region41: #{din_forward.5} parent=0 // pred_fallthru
    _
  // Predicated region
  $region42: #{din_forward.5} parent=0 // pred_check
    _
  $region43: #{din_forward.5} parent=0 // pred_check_branch
    %43 = sbr.rel (0) target = $region45
  $region44: #{din_forward.5} parent=0 // pred_region
    _
  $region45: #{din_forward.5} parent=0 // pred_fallthru
    _
  // Predicated region
  $region46: #{din_forward.5} parent=0 // pred_check
    _
  $region47: #{din_forward.5} parent=0 // pred_check_branch
    %45 = sbr.rel (0) target = $region49
  $region48: #{din_forward.5} parent=0 // pred_region
    _
  $region49: #{din_forward.5} parent=0 // pred_fallthru
    _
  // Predicated region
  $region50: #{din_forward.5} parent=0 // pred_check
    _
  $region51: #{din_forward.5} parent=0 // pred_check_branch
    %47 = sbr.rel (0) target = $region53
  $region52: #{din_forward.5} parent=0 // pred_region
    _
  $region53: #{din_forward.5} parent=0 // pred_fallthru
    _
  // Predicated region
  $region54: #{din_forward.5} parent=0 // pred_check
    _
  $region55: #{din_forward.5} parent=0 // pred_check_branch
    %49 = sbr.rel (0) target = $region57
  $region56: #{din_forward.5} parent=0 // pred_region
    _
  $region57: #{din_forward.5} parent=0 // pred_fallthru
    _
  // Predicated region
  $region58: #{din_forward.5} parent=0 // pred_check
    _
  $region59: #{din_forward.5} parent=0 // pred_check_branch
    %51 = sbr.rel (0) target = $region61
  $region60: #{din_forward.5} parent=0 // pred_region
    _
  $region61: #{din_forward.5} parent=0 // pred_fallthru
    _
  %v52 = vld [vmem:[%s0] sm:$0xff]
  %v53 = vld [vmem:[%s0 + $0x8] sm:$0xff]
  %v54 = vld [vmem:[%s0 + $0x10] sm:$0xff]
  %v55 = vld [vmem:[%s0 + $0x18] sm:$0xff]
  %v56 = vld [vmem:[%s2] sm:$0x1]
  %v57 = vld [vmem:[%s1] sm:$0x1]
  %v58 = vperm.slane %v57, 0
  %v59 = vsub.f32 %v52, %v58
  %v60 = vsub.f32 %v53, %v58
  %v61 = vsub.f32 %v54, %v58
  %v62 = vsub.f32 %v55, %v58
  %v63 = vld [vmem:[%s1 + $0x1] sm:$0x1]
  %v64 = vperm.slane %v63, 0
  %v65 = vmul.f32 %v59, %v64
  %v66 = vmul.f32 %v60, %v64
  %v67 = vmul.f32 %v61, %v64
  %v68 = vmul.f32 %v62, %v64
  %v69 = vxor.u32 %v65, 2147483648
  %v70 = vxor.u32 %v66, 2147483648
  %v71 = vxor.u32 %v67, 2147483648
  %v72 = vxor.u32 %v68, 2147483648
  %v73 = vmul.f32 %v69, 1.442695
  %v74 = vpow.pop %v73
  %v75 = vmul.f32 %v70, 1.442695
  %v76 = vpow.pop %v75
  %v77 = vmul.f32 %v71, 1.442695
  %v78 = vpow.pop %v77
  %v79 = vmul.f32 %v72, 1.442695
  %v80 = vpow.pop %v79
  %v81 = vadd.f32 %v74, 1.0
  %v82 = vadd.f32 %v76, 1.0
  %v83 = vadd.f32 %v78, 1.0
  %v84 = vadd.f32 %v80, 1.0
  %v85 = vrcp.pop %v81
  %v86 = vmul.f32 %v81, %v85
  %v87 = vsub.f32 1.0, %v86
  %v88 = vmul.f32 %v85, %v87
  %v89 = vadd.f32 %v85, %v88
  %vm90 = vweird.f32 %v81
  %vm91 = vweird.f32 %v85
  %vm92 = vmor %vm90, %vm91
  %v93 = vsel %vm92, %v85, %v89
  %v94 = vand.u32 2147483647, %v81
  %vm95 = vcmp.eq.f32.partialorder %v94, 8.507059e+37
  %v96 = vand.u32 %v81, 2147483648
  %v97 = vor.u32 1.1754944e-38, %v96
  %v98 = vsel %vm95, %v97, %v93
  %v99 = vmul.f32 1.0, %v98
  %v100 = vrcp.pop %v82
  %v101 = vmul.f32 %v82, %v100
  %v102 = vsub.f32 1.0, %v101
  %v103 = vmul.f32 %v100, %v102
  %v104 = vadd.f32 %v100, %v103
  %vm105 = vweird.f32 %v82
  %vm106 = vweird.f32 %v100
  %vm107 = vmor %vm105, %vm106
  %v108 = vsel %vm107, %v100, %v104
  %v109 = vand.u32 2147483647, %v82
  %vm110 = vcmp.eq.f32.partialorder %v109, 8.507059e+37
  %v111 = vand.u32 %v82, 2147483648
  %v112 = vor.u32 1.1754944e-38, %v111
  %v113 = vsel %vm110, %v112, %v108
  %v114 = vmul.f32 1.0, %v113
  %v115 = vrcp.pop %v83
  %v116 = vmul.f32 %v83, %v115
  %v117 = vsub.f32 1.0, %v116
  %v118 = vmul.f32 %v115, %v117
  %v119 = vadd.f32 %v115, %v118
  %vm120 = vweird.f32 %v83
  %vm121 = vweird.f32 %v115
  %vm122 = vmor %vm120, %vm121
  %v123 = vsel %vm122, %v115, %v119
  %v124 = vand.u32 2147483647, %v83
  %vm125 = vcmp.eq.f32.partialorder %v124, 8.507059e+37
  %v126 = vand.u32 %v83, 2147483648
  %v127 = vor.u32 1.1754944e-38, %v126
  %v128 = vsel %vm125, %v127, %v123
  %v129 = vmul.f32 1.0, %v128
  %v130 = vrcp.pop %v84
  %v131 = vmul.f32 %v84, %v130
  %v132 = vsub.f32 1.0, %v131
  %v133 = vmul.f32 %v130, %v132
  %v134 = vadd.f32 %v130, %v133
  %vm135 = vweird.f32 %v84
  %vm136 = vweird.f32 %v130
  %vm137 = vmor %vm135, %vm136
  %v138 = vsel %vm137, %v130, %v134
  %v139 = vand.u32 2147483647, %v84
  %vm140 = vcmp.eq.f32.partialorder %v139, 8.507059e+37
  %v141 = vand.u32 %v84, 2147483648
  %v142 = vor.u32 1.1754944e-38, %v141
  %v143 = vsel %vm140, %v142, %v138
  %v144 = vmul.f32 1.0, %v143
  %v145 = vsub.f32 1.0, %v56
  %v147 = vperm.slane %v145, 0
  %v149 = vmul.f32 %v147, %v99
  %v150 = vmul.f32 %v147, %v114
  %v151 = vmul.f32 %v147, %v129
  %v152 = vmul.f32 %v147, %v144
  %v154 = vperm.slane %v56, 0
  %v156 = vadd.f32 %v154, %v149
  %v157 = vadd.f32 %v154, %v150
  %v158 = vadd.f32 %v154, %v151
  %v159 = vadd.f32 %v154, %v152
  %v160 = vmul.f32 %v52, %v156
  %v161 = vmul.f32 %v53, %v157
  %v162 = vmul.f32 %v54, %v158
  %v163 = vmul.f32 %v55, %v159
  %v164 = vld [vmem:[%s3] sm:$0x1]
  %v166 = vperm.slane %v164, 0
  %v168 = vmul.f32 %v160, %v166
  %v169 = vmul.f32 %v161, %v166
  %v170 = vmul.f32 %v162, %v166
  %v171 = vmul.f32 %v163, %v166
  %vm172 = vcmask 64512
  %v173 = vsel %vm172, %v168, 0.0
  %174 = vadd.xlane.f32.xlu0 %v173
  %v175 = vpop.xlane.xlu0 %174
  %v176 = vsel %vm172, %v169, 0.0
  %177 = vadd.xlane.f32.xlu0 %v176
  %v178 = vpop.xlane.xlu0 %177
  %v179 = vsel %vm172, %v170, 0.0
  %180 = vadd.xlane.f32.xlu0 %v179
  %v181 = vpop.xlane.xlu0 %180
  %v182 = vsel %vm172, %v171, 0.0
  %183 = vadd.xlane.f32.xlu0 %v182
  %v184 = vpop.xlane.xlu0 %183
  %s185 = sld [smem:[#allocation2]]
  %v186 = vstv %s185
  %v187 = vadd.f32 %v175, %v186
  %v188 = vadd.f32 %v178, %v186
  %v189 = vadd.f32 %v181, %v186
  %v190 = vadd.f32 %v184, %v186
  %v191 = vld [vmem:[%s4] sm:$0xf]
  %v192 = vsub.f32 1.0, %v191
  %v193 = vmul.f32 %v192, 1e+09
  %v195 = vperm.slane %v193, 0
  %v196 = vlaneseq
  %v197 = vshrl.u32 %v196, 7
  %199 = vset.pattern.permute.xlu0 %v197
  %200 = vperm.xlu0 %199, %v195
  %v201 = vpop.permute.xlu0 %200
  %v202 = vperm.slane %v193, 1
  %v203 = vlaneseq
  %v204 = vshrl.u32 %v203, 7
  %206 = vset.pattern.permute.xlu0 %v204
  %207 = vperm.xlu0 %206, %v202
  %v208 = vpop.permute.xlu0 %207
  %v209 = vperm.slane %v193, 2
  %v210 = vlaneseq
  %v211 = vshrl.u32 %v210, 7
  %213 = vset.pattern.permute.xlu0 %v211
  %214 = vperm.xlu0 %213, %v209
  %v215 = vpop.permute.xlu0 %214
  %v216 = vperm.slane %v193, 3
  %v217 = vlaneseq
  %v218 = vshrl.u32 %v217, 7
  %220 = vset.pattern.permute.xlu0 %v218
  %221 = vperm.xlu0 %220, %v216
  %v222 = vpop.permute.xlu0 %221
  %v227 = vsub.f32 %v187, %v201
  %v228 = vsub.f32 %v188, %v208
  %v229 = vsub.f32 %v189, %v215
  %v230 = vsub.f32 %v190, %v222
  %235 = vset.pattern.permute.xlu0 0
  %236 = vperm.xlu0 %235, %v227
  %v237 = vpop.permute.xlu0 %236
  %238 = vset.pattern.permute.xlu0 0
  %239 = vperm.xlu0 %238, %v228
  %v240 = vpop.permute.xlu0 %239
  %241 = vset.pattern.permute.xlu0 0
  %242 = vperm.xlu0 %241, %v229
  %v243 = vpop.permute.xlu0 %242
  %244 = vset.pattern.permute.xlu0 0
  %245 = vperm.xlu0 %244, %v230
  %v246 = vpop.permute.xlu0 %245
  %v247 = vlaneseq
  %v248 = vand.u32 %v247, 127
  %v249 = vperm.slane %v237, %v248
  %v250 = vperm.slane %v240, %v248
  %v251 = vperm.slane %v243, %v248
  %v252 = vperm.slane %v246, %v248
  %vm253 = vcmask 1041409
  %v254 = vsel %vm253, %v250, %v249
  %vm255 = vcmask 1042434
  %v256 = vsel %vm255, %v251, %v254
  %vm257 = vcmask 1043459
  %v258 = vsel %vm257, %v252, %v256
  %vm260 = vcmask 60416
  %v261 = vsel %vm260, %v258, -inf
  %262 = vmax.xlane.f32.xlu0 %v261
  %v263 = vpop.xlane.xlu0 %262
  %v265 = vperm.slane %v263, 0
  %v266 = vperm.slane %v263, 1
  %v267 = vperm.slane %v263, 2
  %v268 = vperm.slane %v263, 3
  %v273 = vsub.f32 %v227, %v265
  %v274 = vsub.f32 %v228, %v266
  %v275 = vsub.f32 %v229, %v267
  %v276 = vsub.f32 %v230, %v268
  %v277 = vmul.f32 %v273, 1.442695
  %v278 = vpow.pop %v277
  %v279 = vmul.f32 %v274, 1.442695
  %v280 = vpow.pop %v279
  %v281 = vmul.f32 %v275, 1.442695
  %v282 = vpow.pop %v281
  %v283 = vmul.f32 %v276, 1.442695
  %v284 = vpow.pop %v283
  %289 = vset.pattern.permute.xlu0 0
  %290 = vperm.xlu0 %289, %v278
  %v291 = vpop.permute.xlu0 %290
  %292 = vset.pattern.permute.xlu0 0
  %293 = vperm.xlu0 %292, %v280
  %v294 = vpop.permute.xlu0 %293
  %295 = vset.pattern.permute.xlu0 0
  %296 = vperm.xlu0 %295, %v282
  %v297 = vpop.permute.xlu0 %296
  %298 = vset.pattern.permute.xlu0 0
  %299 = vperm.xlu0 %298, %v284
  %v300 = vpop.permute.xlu0 %299
  %v301 = vperm.slane %v291, %v248
  %v302 = vperm.slane %v294, %v248
  %v303 = vperm.slane %v297, %v248
  %v304 = vperm.slane %v300, %v248
  %v305 = vsel %vm253, %v302, %v301
  %v306 = vsel %vm255, %v303, %v305
  %v307 = vsel %vm257, %v304, %v306
  %v309 = vsel %vm260, %v307, 0.0
  %310 = vadd.xlane.f32.xlu0 %v309
  %v311 = vpop.xlane.xlu0 %310
  %v313 = vperm.slane %v311, 0
  %v314 = vperm.slane %v311, 1
  %v315 = vperm.slane %v311, 2
  %v316 = vperm.slane %v311, 3
  %v321 = vrcp.pop %v313
  %v322 = vmul.f32 %v313, %v321
  %v323 = vsub.f32 1.0, %v322
  %v324 = vmul.f32 %v321, %v323
  %v325 = vadd.f32 %v321, %v324
  %vm326 = vweird.f32 %v313
  %vm327 = vweird.f32 %v321
  %vm328 = vmor %vm326, %vm327
  %v329 = vsel %vm328, %v321, %v325
  %v330 = vand.u32 2147483647, %v313
  %vm331 = vcmp.eq.f32.partialorder %v330, 8.507059e+37
  %v332 = vand.u32 %v313, 2147483648
  %v333 = vor.u32 1.1754944e-38, %v332
  %v334 = vsel %vm331, %v333, %v329
  %v335 = vmul.f32 %v278, %v334
  %v336 = vrcp.pop %v314
  %v337 = vmul.f32 %v314, %v336
  %v338 = vsub.f32 1.0, %v337
  %v339 = vmul.f32 %v336, %v338
  %v340 = vadd.f32 %v336, %v339
  %vm341 = vweird.f32 %v314
  %vm342 = vweird.f32 %v336
  %vm343 = vmor %vm341, %vm342
  %v344 = vsel %vm343, %v336, %v340
  %v345 = vand.u32 2147483647, %v314
  %vm346 = vcmp.eq.f32.partialorder %v345, 8.507059e+37
  %v347 = vand.u32 %v314, 2147483648
  %v348 = vor.u32 1.1754944e-38, %v347
  %v349 = vsel %vm346, %v348, %v344
  %v350 = vmul.f32 %v280, %v349
  %v351 = vrcp.pop %v315
  %v352 = vmul.f32 %v315, %v351
  %v353 = vsub.f32 1.0, %v352
  %v354 = vmul.f32 %v351, %v353
  %v355 = vadd.f32 %v351, %v354
  %vm356 = vweird.f32 %v315
  %vm357 = vweird.f32 %v351
  %vm358 = vmor %vm356, %vm357
  %v359 = vsel %vm358, %v351, %v355
  %v360 = vand.u32 2147483647, %v315
  %vm361 = vcmp.eq.f32.partialorder %v360, 8.507059e+37
  %v362 = vand.u32 %v315, 2147483648
  %v363 = vor.u32 1.1754944e-38, %v362
  %v364 = vsel %vm361, %v363, %v359
  %v365 = vmul.f32 %v282, %v364
  %v366 = vrcp.pop %v316
  %v367 = vmul.f32 %v316, %v366
  %v368 = vsub.f32 1.0, %v367
  %v369 = vmul.f32 %v366, %v368
  %v370 = vadd.f32 %v366, %v369
  %vm371 = vweird.f32 %v316
  %vm372 = vweird.f32 %v366
  %vm373 = vmor %vm371, %vm372
  %v374 = vsel %vm373, %v366, %v370
  %v375 = vand.u32 2147483647, %v316
  %vm376 = vcmp.eq.f32.partialorder %v375, 8.507059e+37
  %v377 = vand.u32 %v316, 2147483648
  %v378 = vor.u32 1.1754944e-38, %v377
  %v379 = vsel %vm376, %v378, %v374
  %v380 = vmul.f32 %v284, %v379
  %v381 = vld [vmem:[%s5] sm:$0xff]
  %v382 = vld [vmem:[%s5 + $0x8] sm:$0xff]
  %v383 = vld [vmem:[%s5 + $0x10] sm:$0xff]
  %v384 = vld [vmem:[%s5 + $0x18] sm:$0xff]
  %386 = vset.pattern.permute.xlu0 0
  %387 = vperm.xlu0 %386, %v335
  %v388 = vpop.permute.xlu0 %387
  %391 = vset.pattern.permute.xlu0 0
  %392 = vperm.xlu0 %391, %v350
  %v393 = vpop.permute.xlu0 %392
  %396 = vset.pattern.permute.xlu0 0
  %397 = vperm.xlu0 %396, %v365
  %v398 = vpop.permute.xlu0 %397
  %401 = vset.pattern.permute.xlu0 0
  %402 = vperm.xlu0 %401, %v380
  %v403 = vpop.permute.xlu0 %402
  %v405 = vmul.f32 %v388, %v381
  %v406 = vmul.f32 %v393, %v382
  %v407 = vmul.f32 %v398, %v383
  %v408 = vmul.f32 %v403, %v384
  %vm409 = vcmask 523264
  %v410 = vsel %vm409, %v405, 0.0
  %v411 = vrot.slane %v410, 4
  %v412 = vadd.f32 %v410, %v411
  %v413 = vrot.slane %v412, 2
  %v414 = vadd.f32 %v412, %v413
  %v415 = vrot.slane %v414, 1
  %v416 = vadd.f32 %v414, %v415
  %v417 = vsel %vm409, %v406, 0.0
  %v418 = vrot.slane %v417, 4
  %v419 = vadd.f32 %v417, %v418
  %v420 = vrot.slane %v419, 2
  %v421 = vadd.f32 %v419, %v420
  %v422 = vrot.slane %v421, 1
  %v423 = vadd.f32 %v421, %v422
  %v424 = vsel %vm409, %v407, 0.0
  %v425 = vrot.slane %v424, 4
  %v426 = vadd.f32 %v424, %v425
  %v427 = vrot.slane %v426, 2
  %v428 = vadd.f32 %v426, %v427
  %v429 = vrot.slane %v428, 1
  %v430 = vadd.f32 %v428, %v429
  %v431 = vsel %vm409, %v408, 0.0
  %v432 = vrot.slane %v431, 4
  %v433 = vadd.f32 %v431, %v432
  %v434 = vrot.slane %v433, 2
  %v435 = vadd.f32 %v433, %v434
  %v436 = vrot.slane %v435, 1
  %v437 = vadd.f32 %v435, %v436
  %v438 = vld [vmem:[%s6] sm:$0xf]
  %v439 = vld [vmem:[%s7] sm:$0xff]
  %v440 = vld [vmem:[%s7 + $0x8] sm:$0xff]
  %v441 = vld [vmem:[%s7 + $0x10] sm:$0xff]
  %v442 = vld [vmem:[%s7 + $0x18] sm:$0xff]
  %v443 = vld [vmem:[%s7 + $0x20] sm:$0xff]
  %v444 = vld [vmem:[%s7 + $0x28] sm:$0xff]
  %v445 = vld [vmem:[%s7 + $0x30] sm:$0xff]
  %v446 = vld [vmem:[%s7 + $0x38] sm:$0xff]
  %v447 = vld [vmem:[%s8] sm:$0xff]
  %v448 = vld [vmem:[%s8 + $0x8] sm:$0xff]
  %v449 = vld [vmem:[%s8 + $0x10] sm:$0xff]
  %v450 = vld [vmem:[%s8 + $0x18] sm:$0xff]
  %v451 = vld [vmem:[%s8 + $0x20] sm:$0xff]
  %v452 = vld [vmem:[%s8 + $0x28] sm:$0xff]
  %v453 = vld [vmem:[%s8 + $0x30] sm:$0xff]
  %v454 = vld [vmem:[%s8 + $0x38] sm:$0xff]
  %v456 = vsel %vm409, %v438, 0
  %458 = vmatpush.msra.mxu0 0.0
  %459 = vmatpush.msra.mxu0 0.0
  %460 = vmatpush.msra.mxu0 0.0
  %461 = vmatpush.msra.mxu0 0.0
  %462 = vmatpush.msra.mxu0 0.0
  %463 = vmatpush.msra.mxu0 0.0
  %464 = vmatpush.msra.mxu0 0.0
  %465 = vmatpush.msra.mxu0 0.0
  %466 = vmatpush.msra.mxu0 %v454
  %467 = vmatpush.msra.mxu0 %v453
  %468 = vmatpush.msra.mxu0 %v452
  %469 = vmatpush.msra.mxu0 %v451
  %470 = vmatpush.msra.mxu0 %v450
  %471 = vmatpush.msra.mxu0 %v449
  %472 = vmatpush.msra.mxu0 %v448
  %473 = vmatpush.msra.mxu0 %v447
  %474 = vmatmul.f32.gmra.mxu0 %v456
  %v475 = vpop.f32.mrf.mxu0
  %v476 = vadd.f32 0.0, %v475
  %477 = vdwg.mxu0
  %v482 = vsel %vm253, %v423, %v416
  %v483 = vsel %vm255, %v430, %v482
  %v484 = vsel %vm257, %v437, %v483
  %v485 = vsel %vm409, %v484, 0
  %487 = vmatpush.msra.mxu0 0.0
  %488 = vmatpush.msra.mxu0 0.0
  %489 = vmatpush.msra.mxu0 0.0
  %490 = vmatpush.msra.mxu0 0.0
  %491 = vmatpush.msra.mxu0 0.0
  %492 = vmatpush.msra.mxu0 0.0
  %493 = vmatpush.msra.mxu0 0.0
  %494 = vmatpush.msra.mxu0 0.0
  %495 = vmatpush.msra.mxu0 %v446
  %496 = vmatpush.msra.mxu0 %v445
  %497 = vmatpush.msra.mxu0 %v444
  %498 = vmatpush.msra.mxu0 %v443
  %499 = vmatpush.msra.mxu0 %v442
  %500 = vmatpush.msra.mxu0 %v441
  %501 = vmatpush.msra.mxu0 %v440
  %502 = vmatpush.msra.mxu0 %v439
  %503 = vmatmul.f32.gmra.mxu0 %v485
  %v504 = vpop.f32.mrf.mxu0
  %v505 = vadd.f32 %v476, %v504
  %506 = vdwg.mxu0
  %v507 = vld [vmem:[%s9] sm:$0x1]
  %v509 = vperm.slane %v507, 0
  %v511 = vadd.f32 %v505, %v509
  %v512 = vmax.f32 %v511, 0.0
  %v513 = vld [vmem:[%s10] sm:$0xff]
  %v514 = vld [vmem:[%s10 + $0x8] sm:$0xff]
  %v515 = vld [vmem:[%s10 + $0x10] sm:$0xff]
  %v516 = vld [vmem:[%s10 + $0x18] sm:$0xff]
  %v517 = vld [vmem:[%s10 + $0x20] sm:$0xff]
  %v518 = vld [vmem:[%s10 + $0x28] sm:$0xff]
  %v519 = vld [vmem:[%s10 + $0x30] sm:$0xff]
  %v520 = vld [vmem:[%s10 + $0x38] sm:$0xff]
  %v521 = vld [vmem:[%s10 + $0x40] sm:$0xff]
  %v522 = vld [vmem:[%s10 + $0x48] sm:$0xff]
  %v523 = vld [vmem:[%s10 + $0x50] sm:$0xff]
  %v524 = vld [vmem:[%s10 + $0x58] sm:$0xff]
  %v525 = vld [vmem:[%s10 + $0x60] sm:$0xff]
  %v526 = vld [vmem:[%s10 + $0x68] sm:$0xff]
  %v527 = vld [vmem:[%s10 + $0x70] sm:$0xff]
  %v528 = vld [vmem:[%s10 + $0x78] sm:$0xff]
  %v529 = vld [vmem:[%s11] sm:$0x1]
  %v531 = vperm.slane %v529, 0
  %533 = vmatpush.msra.mxu0 %v528
  %534 = vmatpush.msra.mxu0 %v527
  %535 = vmatpush.msra.mxu0 %v526
  %536 = vmatpush.msra.mxu0 %v525
  %537 = vmatpush.msra.mxu0 %v524
  %538 = vmatpush.msra.mxu0 %v523
  %539 = vmatpush.msra.mxu0 %v522
  %540 = vmatpush.msra.mxu0 %v521
  %541 = vmatpush.msra.mxu0 %v520
  %542 = vmatpush.msra.mxu0 %v519
  %543 = vmatpush.msra.mxu0 %v518
  %544 = vmatpush.msra.mxu0 %v517
  %545 = vmatpush.msra.mxu0 %v516
  %546 = vmatpush.msra.mxu0 %v515
  %547 = vmatpush.msra.mxu0 %v514
  %548 = vmatpush.msra.mxu0 %v513
  %549 = vmatmul.f32.gmra.mxu0 %v512
  %v550 = vpop.f32.mrf.mxu0
  %v551 = vadd.f32 %v531, %v550
  %552 = vdwg.mxu0
  %v553 = vmax.f32 %v551, 0.0
  %v554 = vld [vmem:[%s12] sm:$0x1]
  %v556 = vperm.slane %v554, 0
  %v558 = vmul.f32 %v553, %v556
  %vm559 = vcmask 1043456
  %v560 = vsel %vm559, %v558, 0.0
  %561 = vadd.xlane.f32.xlu0 %v560
  %v562 = vpop.xlane.xlu0 %561
  %s563 = sld [smem:[#allocation3]]
  %v564 = vstv %s563
  %v565 = vadd.f32 %v562, %v564
  %vm566 = vcmask 3072
  %567 = vst.msk [vmem:[%s15] sm:$0xf] %vm566, %v565
  // Predicated region
  $region62: #{din_forward.5} parent=0 // pred_check
    _
  $region63: #{din_forward.5} parent=0 // pred_check_branch
    %569 = sbr.rel (0) target = $region65
  $region64: #{din_forward.5} parent=0 // pred_region
    _
  $region65: #{din_forward.5} parent=0 // pred_fallthru
    _
  // Predicated region
  $region66: #{din_forward.5} parent=0 // pred_check
    _
  $region67: #{din_forward.5} parent=0 // pred_check_branch
    %571 = sbr.rel (0) target = $region69
  $region68: #{din_forward.5} parent=0 // pred_region
    _
  $region69: #{din_forward.5} parent=0 // pred_fallthru
    _

</llo_original>
